<compile_context>
chip_gen: v6e
topology: v6e:2x2x1
jax: 0.10.0
libtpu: 0.0.40
codegen_flags: <defaults>
</compile_context>

<pallas_src>
import functools

import jax
import jax.numpy as jnp
from jax.experimental import pallas as pl
from jax.experimental.pallas import tpu as pltpu

EPS = 1e-5        # nn.BatchNorm2d default
HALO = 128        # zero halo on each side of the flattened pixel axis


def _pix_coords(w, hw, length):
    """Per flattened pixel (over all images): column and row within its image."""
    pos = jax.lax.broadcasted_iota(jnp.int32, (1, length), 1)
    if (hw & (hw - 1)) == 0:
        pix = jnp.bitwise_and(pos, hw - 1)
    else:
        pix = pos % hw
    if (w & (w - 1)) == 0:
        col = jnp.bitwise_and(pix, w - 1)
        row = jnp.right_shift(pix, w.bit_length() - 1)
    else:
        col = pix % w
        row = pix // w
    return col, row


def basic_block_kernel(x_ref, w1_ref, g1_ref, b1_ref, w2_ref, g2_ref, b2_ref,
                       o_ref, zpad_ref, *, h, w):
    """x_ref/o_ref: (Cp, N*HW) f32; w*_ref: (3, Cp, 3*Cp) in MXU dtype;
    g*/b*: (Cp, 1) f32; zpad_ref: (Cp, N*HW + 2*HALO) in MXU dtype."""
    cp, length = x_ref.shape                 # length = N*H*W
    hw = h * w
    cdt = zpad_ref.dtype                     # MXU operand dtype (bf16 or f32)

    # Validity masks for the 3x3 taps on the flattened (all-images) pixel axis.
    col, row = _pix_coords(w, hw, length)
    col_lo = (col >= 1).astype(cdt)          # tap valid when dx == -1
    col_hi = (col <= w - 2).astype(cdt)      # tap valid when dx == +1
    row_lo = (row >= 1).astype(jnp.float32)  # tap valid when dy == -1
    row_hi = (row <= h - 2).astype(jnp.float32)

    # Zero the halos once; both convs reuse the scratch (only the interior is
    # rewritten between them).  Masks zero every out-of-image contribution, but
    # the halo must still hold finite values (0 * stale-NaN would stay NaN).
    zeros_halo = jnp.zeros((cp, HALO), cdt)
    zpad_ref[:, 0:HALO] = zeros_halo
    zpad_ref[:, HALO + length:HALO + length + HALO] = zeros_halo

    def conv3x3(y, w_ref):
        # y: (Cp, L) f32 -> (Cp, L) f32.  One K=3*Cp matmul per dy group over
        # the whole batch, accumulated in f32 (no 9x concat staging tensor).
        zpad_ref[:, HALO:HALO + length] = y.astype(cdt)
        acc = jnp.zeros((cp, length), jnp.float32)
        for ky, dy in enumerate((-1, 0, 1)):
            parts = []
            for dx in (-1, 0, 1):
                s = dy * w + dx
                part = zpad_ref[:, HALO + s:HALO + s + length]   # shifted view
                if dx == -1:
                    part = part * col_lo
                elif dx == 1:
                    part = part * col_hi
                parts.append(part)
            grp = jnp.concatenate(parts, axis=0)                 # (3*Cp, L)
            contrib = jnp.dot(w_ref[ky], grp,
                              preferred_element_type=jnp.float32)
            if dy == -1:          # zero rows whose dy-tap crosses a row /
                contrib = contrib * row_lo       # image boundary
            elif dy == 1:
                contrib = contrib * row_hi
            acc = acc + contrib
        return acc

    def bn_train(y, g, b):
        # Training-mode BatchNorm2d: biased batch stats over (N, H, W),
        # one pass (sum + sum of squares), variance clamped at 0.
        inv_cnt = 1.0 / float(length)
        mean = jnp.sum(y, axis=1, keepdims=True) * inv_cnt       # (Cp, 1)
        msq = jnp.sum(y * y, axis=1, keepdims=True) * inv_cnt
        var = jnp.maximum(msq - mean * mean, 0.0)
        scale = g * jax.lax.rsqrt(var + EPS)
        shift = b - mean * scale
        return y * scale + shift

    x = x_ref[...]                                               # (Cp, L) f32
    y = conv3x3(x, w1_ref)
    y = jnp.maximum(bn_train(y, g1_ref[...], b1_ref[...]), 0.0)  # relu1
    y = conv3x3(y, w2_ref)
    y = bn_train(y, g2_ref[...], b2_ref[...]) + x                # residual
    o_ref[...] = jnp.maximum(y, 0.0).astype(o_ref.dtype)         # relu2


def _full_spec(shape):
    # Whole-array block on a trivial 1-point grid (block == full array dims).
    nd = len(shape)
    return pl.BlockSpec(shape, lambda i: (0,) * nd)


def _round_up(v, m):
    return (v + m - 1) // m * m


@functools.partial(jax.jit, static_argnames=("mxu_dtype",))
def basic_block_forward(x_nchw, w1, g1, b1, w2, g2, b2,
                        mxu_dtype=jnp.bfloat16):
    """BasicBlock forward.  x_nchw: (N, C, H, W); conv weights OIHW; BN params (C,)."""
    n, c_in, h, w = x_nchw.shape
    c_mid, c_out = w1.shape[0], w2.shape[0]
    hw = h * w
    length = n * hw
    cp = _round_up(max(c_in, c_mid, c_out), 8)      # full f32 sublane tile
    assert w + 1 <= HALO
    assert c_in == c_out                            # residual add (downsample=None)
    f32 = jnp.float32

    # Activations: NCHW -> (C, N*H*W): channels on sublanes (padded to Cp),
    # all pixels of all images back-to-back on the lane axis (lane-dense).
    xf = jnp.transpose(x_nchw.astype(f32), (1, 0, 2, 3)).reshape(c_in, length)
    xf = jnp.pad(xf, ((0, cp - c_in), (0, 0)))

    def prep_w(wt):
        # OIHW (Cout, Cin, 3, 3) -> (3, Cp, 3*Cp): one (Cp, 3*Cp) matrix per
        # ky; columns ordered kx*Cp + ci to match the kernel's dx stacking.
        wp = jnp.pad(wt.astype(f32),
                     ((0, cp - wt.shape[0]), (0, cp - wt.shape[1]),
                      (0, 0), (0, 0)))
        return jnp.transpose(wp, (2, 0, 3, 1)).reshape(3, cp, 3 * cp).astype(mxu_dtype)

    def prep_bn(g, b):
        gp = jnp.pad(g.astype(f32), (0, cp - g.shape[0]),
                     constant_values=1.0).reshape(cp, 1)
        bp = jnp.pad(b.astype(f32), (0, cp - b.shape[0])).reshape(cp, 1)
        return gp, bp

    w1k, w2k = prep_w(w1), prep_w(w2)
    g1p, b1p = prep_bn(g1, b1)
    g2p, b2p = prep_bn(g2, b2)

    kernel = functools.partial(basic_block_kernel, h=h, w=w)
    flops = 2 * (2 * cp * 9 * cp * length)          # two 3x3 convs on the MXU
    bytes_accessed = ((xf.size + cp * length) * 4
                      + (w1k.size + w2k.size) * jnp.dtype(mxu_dtype).itemsize
                      + (g1p.size + b1p.size + g2p.size + b2p.size) * 4)

    out = pl.pallas_call(
        kernel,
        out_shape=jax.ShapeDtypeStruct((cp, length), f32),
        grid=(1,),
        in_specs=[_full_spec(xf.shape), _full_spec(w1k.shape),
                  _full_spec(g1p.shape), _full_spec(b1p.shape),
                  _full_spec(w2k.shape), _full_spec(g2p.shape),
                  _full_spec(b2p.shape)],
        out_specs=_full_spec((cp, length)),
        scratch_shapes=[pltpu.VMEM((cp, length + 2 * HALO), mxu_dtype)],
        compiler_params=pltpu.CompilerParams(
            dimension_semantics=("arbitrary",)),
        cost_estimate=pl.CostEstimate(flops=flops, transcendentals=2 * cp,
                                      bytes_accessed=bytes_accessed),
    )(xf, w1k, g1p, b1p, w2k, g2p, b2p)

    # (Cp, N*HW) -> (N, C, H, W)
    return jnp.transpose(out[:c_out].reshape(c_out, n, h, w), (1, 0, 2, 3))


def _reference_forward(x, w1, g1, b1, w2, g2, b2):
    """Pure-JAX reference (lax.conv, NCHW/OIHW) for the correctness check."""
    def conv(v, wt):
        return jax.lax.conv_general_dilated(
            v, wt, window_strides=(1, 1), padding=((1, 1), (1, 1)),
            dimension_numbers=("NCHW", "OIHW", "NCHW"),
            precision=jax.lax.Precision.HIGHEST)

    def bn(v, g, b):
        m = jnp.mean(v, axis=(0, 2, 3), keepdims=True)
        var = jnp.mean((v - m) ** 2, axis=(0, 2, 3), keepdims=True)
        return ((v - m) * jax.lax.rsqrt(var + EPS) * g.reshape(1, -1, 1, 1)
                + b.reshape(1, -1, 1, 1))

    y = jax.nn.relu(bn(conv(x, w1), g1, b1))
    y = bn(conv(y, w2), g2, b2) + x
    return jax.nn.relu(y)


if __name__ == "__main__":
    # BasicBlock(in_ch=4, block_ch=4, stride=1, downsample=None), expansion=1.
    N, C, H, W = 2, 4, 16, 16
    c_mid = 4
    c_out = c_mid * 1

    key = jax.random.PRNGKey(0)
    kx, kw1, kw2, kg1, kb1, kg2, kb2 = jax.random.split(key, 7)

    x = jax.random.normal(kx, (N, C, H, W), jnp.float32)
    w1 = 0.1 * jax.random.normal(kw1, (c_mid, C, 3, 3), jnp.float32)      # OIHW
    w2 = 0.1 * jax.random.normal(kw2, (c_out, c_mid, 3, 3), jnp.float32)  # OIHW
    g1 = 1.0 + 0.1 * jax.random.normal(kg1, (c_mid,), jnp.float32)
    b1 = 0.1 * jax.random.normal(kb1, (c_mid,), jnp.float32)
    g2 = 1.0 + 0.1 * jax.random.normal(kg2, (c_out,), jnp.float32)
    b2 = 0.1 * jax.random.normal(kb2, (c_out,), jnp.float32)

    ref = jax.block_until_ready(_reference_forward(x, w1, g1, b1, w2, g2, b2))

    # f32-MXU path: tight check against the f32 reference.
    out_f32 = jax.block_until_ready(
        basic_block_forward(x, w1, g1, b1, w2, g2, b2, mxu_dtype=jnp.float32))
    assert out_f32.shape == (N, c_out, H, W), out_f32.shape
    assert bool(jnp.all(jnp.isfinite(out_f32)))
    err_f32 = float(jnp.max(jnp.abs(out_f32 - ref)))
    assert bool(jnp.allclose(out_f32, ref, atol=1e-3, rtol=1e-3)), err_f32

    # bf16-MXU path (default, per perf review): bf16 operand rounding across
    # two chained convs -> bf16-appropriate tolerance vs. the f32 reference.
    out_bf16 = jax.block_until_ready(
        basic_block_forward(x, w1, g1, b1, w2, g2, b2))
    assert out_bf16.shape == (N, c_out, H, W), out_bf16.shape
    assert bool(jnp.all(jnp.isfinite(out_bf16)))
    err_bf16 = float(jnp.max(jnp.abs(out_bf16 - ref)))
    assert bool(jnp.allclose(out_bf16, ref, atol=5e-2, rtol=5e-2)), err_bf16

    print("KERNEL_OK")
</pallas_src>

<mosaic_0001>
module attributes {stable_mosaic.version = 11 : i64} {
  func.func @basic_block_kernel(%arg0: i32, %arg1: memref<8x512xf32, #tpu.memory_space<vmem>>, %arg2: memref<3x8x24xf32, #tpu.memory_space<vmem>>, %arg3: memref<8x1xf32, #tpu.memory_space<vmem>>, %arg4: memref<8x1xf32, #tpu.memory_space<vmem>>, %arg5: memref<3x8x24xf32, #tpu.memory_space<vmem>>, %arg6: memref<8x1xf32, #tpu.memory_space<vmem>>, %arg7: memref<8x1xf32, #tpu.memory_space<vmem>>, %arg8: memref<8x512xf32, #tpu.memory_space<vmem>>, %arg9: memref<8x768xf32, #tpu.memory_space<vmem>>) attributes {dimension_semantics = [#tpu.dimension_semantics<arbitrary>], iteration_bounds = array<i64: 1>, scalar_prefetch = 0 : i64, scratch_operands = 1 : i64, tpu.core_type = #tpu.core_type<tc>, window_params = [{pipeline_mode = #tpu.pipeline_mode<synchronous>, transform_indices = @transform_0, window_bounds = array<i64: 8, 512>}, {pipeline_mode = #tpu.pipeline_mode<synchronous>, transform_indices = @transform_1, window_bounds = array<i64: 3, 8, 24>}, {pipeline_mode = #tpu.pipeline_mode<synchronous>, transform_indices = @transform_2, window_bounds = array<i64: 8, 1>}, {pipeline_mode = #tpu.pipeline_mode<synchronous>, transform_indices = @transform_3, window_bounds = array<i64: 8, 1>}, {pipeline_mode = #tpu.pipeline_mode<synchronous>, transform_indices = @transform_4, window_bounds = array<i64: 3, 8, 24>}, {pipeline_mode = #tpu.pipeline_mode<synchronous>, transform_indices = @transform_5, window_bounds = array<i64: 8, 1>}, {pipeline_mode = #tpu.pipeline_mode<synchronous>, transform_indices = @transform_6, window_bounds = array<i64: 8, 1>}, {pipeline_mode = #tpu.pipeline_mode<synchronous>, transform_indices = @transform_7, window_bounds = array<i64: 8, 512>}]} {
    %0 = tpu.iota {dimensions = array<i32: 1>} : vector<1x512xi32>
    %c255_i32 = arith.constant 255 : i32
    %1 = vector.broadcast %c255_i32 : i32 to vector<1x512xi32>
    %2 = arith.andi %0, %1 : vector<1x512xi32>
    %c15_i32 = arith.constant 15 : i32
    %3 = vector.broadcast %c15_i32 : i32 to vector<1x512xi32>
    %4 = arith.andi %2, %3 : vector<1x512xi32>
    %c4_i32 = arith.constant 4 : i32
    %5 = vector.broadcast %c4_i32 : i32 to vector<1x512xi32>
    %6 = arith.shrsi %2, %5 : vector<1x512xi32>
    %c1_i32 = arith.constant 1 : i32
    %7 = vector.broadcast %c1_i32 : i32 to vector<1x512xi32>
    %8 = arith.cmpi sge, %4, %7 : vector<1x512xi32>
    %9 = arith.extui %8 : vector<1x512xi1> to vector<1x512xi32>
    %10 = arith.sitofp %9 : vector<1x512xi32> to vector<1x512xf32>
    %c14_i32 = arith.constant 14 : i32
    %11 = vector.broadcast %c14_i32 : i32 to vector<1x512xi32>
    %12 = arith.cmpi sle, %4, %11 : vector<1x512xi32>
    %13 = arith.extui %12 : vector<1x512xi1> to vector<1x512xi32>
    %14 = arith.sitofp %13 : vector<1x512xi32> to vector<1x512xf32>
    %c1_i32_0 = arith.constant 1 : i32
    %15 = vector.broadcast %c1_i32_0 : i32 to vector<1x512xi32>
    %16 = arith.cmpi sge, %6, %15 : vector<1x512xi32>
    %17 = arith.extui %16 : vector<1x512xi1> to vector<1x512xi32>
    %18 = arith.sitofp %17 : vector<1x512xi32> to vector<1x512xf32>
    %c14_i32_1 = arith.constant 14 : i32
    %19 = vector.broadcast %c14_i32_1 : i32 to vector<1x512xi32>
    %20 = arith.cmpi sle, %6, %19 : vector<1x512xi32>
    %21 = arith.extui %20 : vector<1x512xi1> to vector<1x512xi32>
    %22 = arith.sitofp %21 : vector<1x512xi32> to vector<1x512xf32>
    %cst = arith.constant 0.000000e+00 : f32
    %23 = vector.broadcast %cst : f32 to vector<8x128xf32>
    %c0 = arith.constant 0 : index
    %c0_2 = arith.constant 0 : index
    %24 = vector.load %arg9[%c0, %c0_2] : memref<8x768xf32, #tpu.memory_space<vmem>>, vector<8x128xf32>
    tpu.vector_store %arg9[%c0, %c0_2], %23 {strides = array<i32>} : memref<8x768xf32, #tpu.memory_space<vmem>>, vector<8x128xf32>,
    %c0_3 = arith.constant 0 : index
    %c640 = arith.constant 640 : index
    %25 = vector.load %arg9[%c0_3, %c640] : memref<8x768xf32, #tpu.memory_space<vmem>>, vector<8x128xf32>
    tpu.vector_store %arg9[%c0_3, %c640], %23 {strides = array<i32>} : memref<8x768xf32, #tpu.memory_space<vmem>>, vector<8x128xf32>,
    %c0_4 = arith.constant 0 : index
    %c0_5 = arith.constant 0 : index
    %26 = vector.load %arg1[%c0_4, %c0_5] : memref<8x512xf32, #tpu.memory_space<vmem>>, vector<8x512xf32>
    %c0_6 = arith.constant 0 : index
    %c128 = arith.constant 128 : index
    %27 = vector.load %arg9[%c0_6, %c128] : memref<8x768xf32, #tpu.memory_space<vmem>>, vector<8x512xf32>
    tpu.vector_store %arg9[%c0_6, %c128], %26 {strides = array<i32>} : memref<8x768xf32, #tpu.memory_space<vmem>>, vector<8x512xf32>,
    %cst_7 = arith.constant 0.000000e+00 : f32
    %28 = vector.broadcast %cst_7 : f32 to vector<8x512xf32>
    %c0_8 = arith.constant 0 : index
    %c111 = arith.constant 111 : index
    %29 = vector.load %arg9[%c0_8, %c111] : memref<8x768xf32, #tpu.memory_space<vmem>>, vector<8x512xf32>
    %30 = vector.broadcast %10 : vector<1x512xf32> to vector<8x512xf32>
    %31 = arith.mulf %29, %30 : vector<8x512xf32>
    %c0_9 = arith.constant 0 : index
    %c112 = arith.constant 112 : index
    %32 = vector.load %arg9[%c0_9, %c112] : memref<8x768xf32, #tpu.memory_space<vmem>>, vector<8x512xf32>
    %c0_10 = arith.constant 0 : index
    %c113 = arith.constant 113 : index
    %33 = vector.load %arg9[%c0_10, %c113] : memref<8x768xf32, #tpu.memory_space<vmem>>, vector<8x512xf32>
    %34 = vector.broadcast %14 : vector<1x512xf32> to vector<8x512xf32>
    %35 = arith.mulf %33, %34 : vector<8x512xf32>
    %36 = tpu.concatenate %31, %32, %35 in 0 : vector<8x512xf32>, vector<8x512xf32>, vector<8x512xf32> -> vector<24x512xf32>
    %c0_11 = arith.constant 0 : index
    %c0_12 = arith.constant 0 : index
    %c0_13 = arith.constant 0 : index
    %37 = vector.load %arg2[%c0_11, %c0_12, %c0_13] : memref<3x8x24xf32, #tpu.memory_space<vmem>>, vector<1x8x24xf32>
    %38 = vector.shape_cast %37 : vector<1x8x24xf32> to vector<8x24xf32>
    %cst_14 = arith.constant dense<0.000000e+00> : vector<8x512xf32>
    %39 = tpu.matmul %38, %36, %cst_14 {dimension_numbers = #tpu.dot_dimension_numbers<[1], [0], [0], [1], [0, 0, 1, 1], [], []>} : vector<8x24xf32>, vector<24x512xf32>, vector<8x512xf32> -> vector<8x512xf32>
    %40 = vector.broadcast %18 : vector<1x512xf32> to vector<8x512xf32>
    %41 = arith.mulf %39, %40 : vector<8x512xf32>
    %42 = arith.addf %28, %41 : vector<8x512xf32>
    %c0_15 = arith.constant 0 : index
    %c127 = arith.constant 127 : index
    %43 = vector.load %arg9[%c0_15, %c127] : memref<8x768xf32, #tpu.memory_space<vmem>>, vector<8x512xf32>
    %44 = vector.broadcast %10 : vector<1x512xf32> to vector<8x512xf32>
    %45 = arith.mulf %43, %44 : vector<8x512xf32>
    %c0_16 = arith.constant 0 : index
    %c128_17 = arith.constant 128 : index
    %46 = vector.load %arg9[%c0_16, %c128_17] : memref<8x768xf32, #tpu.memory_space<vmem>>, vector<8x512xf32>
    %c0_18 = arith.constant 0 : index
    %c129 = arith.constant 129 : index
    %47 = vector.load %arg9[%c0_18, %c129] : memref<8x768xf32, #tpu.memory_space<vmem>>, vector<8x512xf32>
    %48 = vector.broadcast %14 : vector<1x512xf32> to vector<8x512xf32>
    %49 = arith.mulf %47, %48 : vector<8x512xf32>
    %50 = tpu.concatenate %45, %46, %49 in 0 : vector<8x512xf32>, vector<8x512xf32>, vector<8x512xf32> -> vector<24x512xf32>
    %c1 = arith.constant 1 : index
    %c0_19 = arith.constant 0 : index
    %c0_20 = arith.constant 0 : index
    %51 = vector.load %arg2[%c1, %c0_19, %c0_20] : memref<3x8x24xf32, #tpu.memory_space<vmem>>, vector<1x8x24xf32>
    %52 = vector.shape_cast %51 : vector<1x8x24xf32> to vector<8x24xf32>
    %cst_21 = arith.constant dense<0.000000e+00> : vector<8x512xf32>
    %53 = tpu.matmul %52, %50, %cst_21 {dimension_numbers = #tpu.dot_dimension_numbers<[1], [0], [0], [1], [0, 0, 1, 1], [], []>} : vector<8x24xf32>, vector<24x512xf32>, vector<8x512xf32> -> vector<8x512xf32>
    %54 = arith.addf %42, %53 : vector<8x512xf32>
    %c0_22 = arith.constant 0 : index
    %c143 = arith.constant 143 : index
    %55 = vector.load %arg9[%c0_22, %c143] : memref<8x768xf32, #tpu.memory_space<vmem>>, vector<8x512xf32>
    %56 = vector.broadcast %10 : vector<1x512xf32> to vector<8x512xf32>
    %57 = arith.mulf %55, %56 : vector<8x512xf32>
    %c0_23 = arith.constant 0 : index
    %c144 = arith.constant 144 : index
    %58 = vector.load %arg9[%c0_23, %c144] : memref<8x768xf32, #tpu.memory_space<vmem>>, vector<8x512xf32>
    %c0_24 = arith.constant 0 : index
    %c145 = arith.constant 145 : index
    %59 = vector.load %arg9[%c0_24, %c145] : memref<8x768xf32, #tpu.memory_space<vmem>>, vector<8x512xf32>
    %60 = vector.broadcast %14 : vector<1x512xf32> to vector<8x512xf32>
    %61 = arith.mulf %59, %60 : vector<8x512xf32>
    %62 = tpu.concatenate %57, %58, %61 in 0 : vector<8x512xf32>, vector<8x512xf32>, vector<8x512xf32> -> vector<24x512xf32>
    %c2 = arith.constant 2 : index
    %c0_25 = arith.constant 0 : index
    %c0_26 = arith.constant 0 : index
    %63 = vector.load %arg2[%c2, %c0_25, %c0_26] : memref<3x8x24xf32, #tpu.memory_space<vmem>>, vector<1x8x24xf32>
    %64 = vector.shape_cast %63 : vector<1x8x24xf32> to vector<8x24xf32>
    %cst_27 = arith.constant dense<0.000000e+00> : vector<8x512xf32>
    %65 = tpu.matmul %64, %62, %cst_27 {dimension_numbers = #tpu.dot_dimension_numbers<[1], [0], [0], [1], [0, 0, 1, 1], [], []>} : vector<8x24xf32>, vector<24x512xf32>, vector<8x512xf32> -> vector<8x512xf32>
    %66 = vector.broadcast %22 : vector<1x512xf32> to vector<8x512xf32>
    %67 = arith.mulf %65, %66 : vector<8x512xf32>
    %68 = arith.addf %54, %67 : vector<8x512xf32>
    %c0_28 = arith.constant 0 : index
    %c0_29 = arith.constant 0 : index
    %69 = vector.load %arg3[%c0_28, %c0_29] : memref<8x1xf32, #tpu.memory_space<vmem>>, vector<8x1xf32>
    %c0_30 = arith.constant 0 : index
    %c0_31 = arith.constant 0 : index
    %70 = vector.load %arg4[%c0_30, %c0_31] : memref<8x1xf32, #tpu.memory_space<vmem>>, vector<8x1xf32>
    %cst_32 = arith.constant dense<0.000000e+00> : vector<8xf32>
    %71 = vector.multi_reduction <add>, %68, %cst_32 [1] : vector<8x512xf32> to vector<8xf32>
    %72 = vector.shape_cast %71 : vector<8xf32> to vector<8x1xf32>
    %cst_33 = arith.constant 0.001953125 : f32
    %73 = vector.broadcast %cst_33 : f32 to vector<8x1xf32>
    %74 = arith.mulf %72, %73 : vector<8x1xf32>
    %75 = arith.mulf %68, %68 : vector<8x512xf32>
    %cst_34 = arith.constant dense<0.000000e+00> : vector<8xf32>
    %76 = vector.multi_reduction <add>, %75, %cst_34 [1] : vector<8x512xf32> to vector<8xf32>
    %77 = vector.shape_cast %76 : vector<8xf32> to vector<8x1xf32>
    %cst_35 = arith.constant 0.001953125 : f32
    %78 = vector.broadcast %cst_35 : f32 to vector<8x1xf32>
    %79 = arith.mulf %77, %78 : vector<8x1xf32>
    %80 = arith.mulf %74, %74 : vector<8x1xf32>
    %81 = arith.subf %79, %80 : vector<8x1xf32>
    %cst_36 = arith.constant 0.000000e+00 : f32
    %82 = vector.broadcast %cst_36 : f32 to vector<8x1xf32>
    %83 = arith.maximumf %81, %82 : vector<8x1xf32>
    %cst_37 = arith.constant 9.99999974E-6 : f32
    %84 = vector.broadcast %cst_37 : f32 to vector<8x1xf32>
    %85 = arith.addf %83, %84 : vector<8x1xf32>
    %86 = math.rsqrt %85 : vector<8x1xf32>
    %87 = arith.mulf %69, %86 : vector<8x1xf32>
    %88 = arith.mulf %74, %87 : vector<8x1xf32>
    %89 = arith.subf %70, %88 : vector<8x1xf32>
    %90 = vector.broadcast %87 : vector<8x1xf32> to vector<8x512xf32>
    %91 = arith.mulf %68, %90 : vector<8x512xf32>
    %92 = vector.broadcast %89 : vector<8x1xf32> to vector<8x512xf32>
    %93 = arith.addf %91, %92 : vector<8x512xf32>
    %cst_38 = arith.constant 0.000000e+00 : f32
    %94 = vector.broadcast %cst_38 : f32 to vector<8x512xf32>
    %95 = arith.maximumf %93, %94 : vector<8x512xf32>
    %c0_39 = arith.constant 0 : index
    %c128_40 = arith.constant 128 : index
    %96 = vector.load %arg9[%c0_39, %c128_40] : memref<8x768xf32, #tpu.memory_space<vmem>>, vector<8x512xf32>
    tpu.vector_store %arg9[%c0_39, %c128_40], %95 {strides = array<i32>} : memref<8x768xf32, #tpu.memory_space<vmem>>, vector<8x512xf32>,
    %cst_41 = arith.constant 0.000000e+00 : f32
    %97 = vector.broadcast %cst_41 : f32 to vector<8x512xf32>
    %c0_42 = arith.constant 0 : index
    %c111_43 = arith.constant 111 : index
    %98 = vector.load %arg9[%c0_42, %c111_43] : memref<8x768xf32, #tpu.memory_space<vmem>>, vector<8x512xf32>
    %99 = vector.broadcast %10 : vector<1x512xf32> to vector<8x512xf32>
    %100 = arith.mulf %98, %99 : vector<8x512xf32>
    %c0_44 = arith.constant 0 : index
    %c112_45 = arith.constant 112 : index
    %101 = vector.load %arg9[%c0_44, %c112_45] : memref<8x768xf32, #tpu.memory_space<vmem>>, vector<8x512xf32>
    %c0_46 = arith.constant 0 : index
    %c113_47 = arith.constant 113 : index
    %102 = vector.load %arg9[%c0_46, %c113_47] : memref<8x768xf32, #tpu.memory_space<vmem>>, vector<8x512xf32>
    %103 = vector.broadcast %14 : vector<1x512xf32> to vector<8x512xf32>
    %104 = arith.mulf %102, %103 : vector<8x512xf32>
    %105 = tpu.concatenate %100, %101, %104 in 0 : vector<8x512xf32>, vector<8x512xf32>, vector<8x512xf32> -> vector<24x512xf32>
    %c0_48 = arith.constant 0 : index
    %c0_49 = arith.constant 0 : index
    %c0_50 = arith.constant 0 : index
    %106 = vector.load %arg5[%c0_48, %c0_49, %c0_50] : memref<3x8x24xf32, #tpu.memory_space<vmem>>, vector<1x8x24xf32>
    %107 = vector.shape_cast %106 : vector<1x8x24xf32> to vector<8x24xf32>
    %cst_51 = arith.constant dense<0.000000e+00> : vector<8x512xf32>
    %108 = tpu.matmul %107, %105, %cst_51 {dimension_numbers = #tpu.dot_dimension_numbers<[1], [0], [0], [1], [0, 0, 1, 1], [], []>} : vector<8x24xf32>, vector<24x512xf32>, vector<8x512xf32> -> vector<8x512xf32>
    %109 = vector.broadcast %18 : vector<1x512xf32> to vector<8x512xf32>
    %110 = arith.mulf %108, %109 : vector<8x512xf32>
    %111 = arith.addf %97, %110 : vector<8x512xf32>
    %c0_52 = arith.constant 0 : index
    %c127_53 = arith.constant 127 : index
    %112 = vector.load %arg9[%c0_52, %c127_53] : memref<8x768xf32, #tpu.memory_space<vmem>>, vector<8x512xf32>
    %113 = vector.broadcast %10 : vector<1x512xf32> to vector<8x512xf32>
    %114 = arith.mulf %112, %113 : vector<8x512xf32>
    %c0_54 = arith.constant 0 : index
    %c128_55 = arith.constant 128 : index
    %115 = vector.load %arg9[%c0_54, %c128_55] : memref<8x768xf32, #tpu.memory_space<vmem>>, vector<8x512xf32>
    %c0_56 = arith.constant 0 : index
    %c129_57 = arith.constant 129 : index
    %116 = vector.load %arg9[%c0_56, %c129_57] : memref<8x768xf32, #tpu.memory_space<vmem>>, vector<8x512xf32>
    %117 = vector.broadcast %14 : vector<1x512xf32> to vector<8x512xf32>
    %118 = arith.mulf %116, %117 : vector<8x512xf32>
    %119 = tpu.concatenate %114, %115, %118 in 0 : vector<8x512xf32>, vector<8x512xf32>, vector<8x512xf32> -> vector<24x512xf32>
    %c1_58 = arith.constant 1 : index
    %c0_59 = arith.constant 0 : index
    %c0_60 = arith.constant 0 : index
    %120 = vector.load %arg5[%c1_58, %c0_59, %c0_60] : memref<3x8x24xf32, #tpu.memory_space<vmem>>, vector<1x8x24xf32>
    %121 = vector.shape_cast %120 : vector<1x8x24xf32> to vector<8x24xf32>
    %cst_61 = arith.constant dense<0.000000e+00> : vector<8x512xf32>
    %122 = tpu.matmul %121, %119, %cst_61 {dimension_numbers = #tpu.dot_dimension_numbers<[1], [0], [0], [1], [0, 0, 1, 1], [], []>} : vector<8x24xf32>, vector<24x512xf32>, vector<8x512xf32> -> vector<8x512xf32>
    %123 = arith.addf %111, %122 : vector<8x512xf32>
    %c0_62 = arith.constant 0 : index
    %c143_63 = arith.constant 143 : index
    %124 = vector.load %arg9[%c0_62, %c143_63] : memref<8x768xf32, #tpu.memory_space<vmem>>, vector<8x512xf32>
    %125 = vector.broadcast %10 : vector<1x512xf32> to vector<8x512xf32>
    %126 = arith.mulf %124, %125 : vector<8x512xf32>
    %c0_64 = arith.constant 0 : index
    %c144_65 = arith.constant 144 : index
    %127 = vector.load %arg9[%c0_64, %c144_65] : memref<8x768xf32, #tpu.memory_space<vmem>>, vector<8x512xf32>
    %c0_66 = arith.constant 0 : index
    %c145_67 = arith.constant 145 : index
    %128 = vector.load %arg9[%c0_66, %c145_67] : memref<8x768xf32, #tpu.memory_space<vmem>>, vector<8x512xf32>
    %129 = vector.broadcast %14 : vector<1x512xf32> to vector<8x512xf32>
    %130 = arith.mulf %128, %129 : vector<8x512xf32>
    %131 = tpu.concatenate %126, %127, %130 in 0 : vector<8x512xf32>, vector<8x512xf32>, vector<8x512xf32> -> vector<24x512xf32>
    %c2_68 = arith.constant 2 : index
    %c0_69 = arith.constant 0 : index
    %c0_70 = arith.constant 0 : index
    %132 = vector.load %arg5[%c2_68, %c0_69, %c0_70] : memref<3x8x24xf32, #tpu.memory_space<vmem>>, vector<1x8x24xf32>
    %133 = vector.shape_cast %132 : vector<1x8x24xf32> to vector<8x24xf32>
    %cst_71 = arith.constant dense<0.000000e+00> : vector<8x512xf32>
    %134 = tpu.matmul %133, %131, %cst_71 {dimension_numbers = #tpu.dot_dimension_numbers<[1], [0], [0], [1], [0, 0, 1, 1], [], []>} : vector<8x24xf32>, vector<24x512xf32>, vector<8x512xf32> -> vector<8x512xf32>
    %135 = vector.broadcast %22 : vector<1x512xf32> to vector<8x512xf32>
    %136 = arith.mulf %134, %135 : vector<8x512xf32>
    %137 = arith.addf %123, %136 : vector<8x512xf32>
    %c0_72 = arith.constant 0 : index
    %c0_73 = arith.constant 0 : index
    %138 = vector.load %arg6[%c0_72, %c0_73] : memref<8x1xf32, #tpu.memory_space<vmem>>, vector<8x1xf32>
    %c0_74 = arith.constant 0 : index
    %c0_75 = arith.constant 0 : index
    %139 = vector.load %arg7[%c0_74, %c0_75] : memref<8x1xf32, #tpu.memory_space<vmem>>, vector<8x1xf32>
    %cst_76 = arith.constant dense<0.000000e+00> : vector<8xf32>
    %140 = vector.multi_reduction <add>, %137, %cst_76 [1] : vector<8x512xf32> to vector<8xf32>
    %141 = vector.shape_cast %140 : vector<8xf32> to vector<8x1xf32>
    %cst_77 = arith.constant 0.001953125 : f32
    %142 = vector.broadcast %cst_77 : f32 to vector<8x1xf32>
    %143 = arith.mulf %141, %142 : vector<8x1xf32>
    %144 = arith.mulf %137, %137 : vector<8x512xf32>
    %cst_78 = arith.constant dense<0.000000e+00> : vector<8xf32>
    %145 = vector.multi_reduction <add>, %144, %cst_78 [1] : vector<8x512xf32> to vector<8xf32>
    %146 = vector.shape_cast %145 : vector<8xf32> to vector<8x1xf32>
    %cst_79 = arith.constant 0.001953125 : f32
    %147 = vector.broadcast %cst_79 : f32 to vector<8x1xf32>
    %148 = arith.mulf %146, %147 : vector<8x1xf32>
    %149 = arith.mulf %143, %143 : vector<8x1xf32>
    %150 = arith.subf %148, %149 : vector<8x1xf32>
    %cst_80 = arith.constant 0.000000e+00 : f32
    %151 = vector.broadcast %cst_80 : f32 to vector<8x1xf32>
    %152 = arith.maximumf %150, %151 : vector<8x1xf32>
    %cst_81 = arith.constant 9.99999974E-6 : f32
    %153 = vector.broadcast %cst_81 : f32 to vector<8x1xf32>
    %154 = arith.addf %152, %153 : vector<8x1xf32>
    %155 = math.rsqrt %154 : vector<8x1xf32>
    %156 = arith.mulf %138, %155 : vector<8x1xf32>
    %157 = arith.mulf %143, %156 : vector<8x1xf32>
    %158 = arith.subf %139, %157 : vector<8x1xf32>
    %159 = vector.broadcast %156 : vector<8x1xf32> to vector<8x512xf32>
    %160 = arith.mulf %137, %159 : vector<8x512xf32>
    %161 = vector.broadcast %158 : vector<8x1xf32> to vector<8x512xf32>
    %162 = arith.addf %160, %161 : vector<8x512xf32>
    %163 = arith.addf %162, %26 : vector<8x512xf32>
    %cst_82 = arith.constant 0.000000e+00 : f32
    %164 = vector.broadcast %cst_82 : f32 to vector<8x512xf32>
    %165 = arith.maximumf %163, %164 : vector<8x512xf32>
    %c0_83 = arith.constant 0 : index
    %c0_84 = arith.constant 0 : index
    %166 = vector.load %arg8[%c0_83, %c0_84] : memref<8x512xf32, #tpu.memory_space<vmem>>, vector<8x512xf32>
    tpu.vector_store %arg8[%c0_83, %c0_84], %165 {strides = array<i32>} : memref<8x512xf32, #tpu.memory_space<vmem>>, vector<8x512xf32>,
    return
  }
  func.func @transform_0(%arg0: i32) -> (i32, i32) {
    %c0_i32 = arith.constant 0 : i32
    %c0_i32_0 = arith.constant 0 : i32
    %c0_i32_1 = arith.constant 0 : i32
    return %c0_i32, %c0_i32_0 : i32, i32
  }
  func.func @transform_1(%arg0: i32) -> (i32, i32, i32) {
    %c0_i32 = arith.constant 0 : i32
    %c0_i32_0 = arith.constant 0 : i32
    %c0_i32_1 = arith.constant 0 : i32
    %c0_i32_2 = arith.constant 0 : i32
    return %c0_i32, %c0_i32_0, %c0_i32_1 : i32, i32, i32
  }
  func.func @transform_2(%arg0: i32) -> (i32, i32) {
    %c0_i32 = arith.constant 0 : i32
    %c0_i32_0 = arith.constant 0 : i32
    %c0_i32_1 = arith.constant 0 : i32
    return %c0_i32, %c0_i32_0 : i32, i32
  }
  func.func @transform_3(%arg0: i32) -> (i32, i32) {
    %c0_i32 = arith.constant 0 : i32
    %c0_i32_0 = arith.constant 0 : i32
    %c0_i32_1 = arith.constant 0 : i32
    return %c0_i32, %c0_i32_0 : i32, i32
  }
  func.func @transform_4(%arg0: i32) -> (i32, i32, i32) {
    %c0_i32 = arith.constant 0 : i32
    %c0_i32_0 = arith.constant 0 : i32
    %c0_i32_1 = arith.constant 0 : i32
    %c0_i32_2 = arith.constant 0 : i32
    return %c0_i32, %c0_i32_0, %c0_i32_1 : i32, i32, i32
  }
  func.func @transform_5(%arg0: i32) -> (i32, i32) {
    %c0_i32 = arith.constant 0 : i32
    %c0_i32_0 = arith.constant 0 : i32
    %c0_i32_1 = arith.constant 0 : i32
    return %c0_i32, %c0_i32_0 : i32, i32
  }
  func.func @transform_6(%arg0: i32) -> (i32, i32) {
    %c0_i32 = arith.constant 0 : i32
    %c0_i32_0 = arith.constant 0 : i32
    %c0_i32_1 = arith.constant 0 : i32
    return %c0_i32, %c0_i32_0 : i32, i32
  }
  func.func @transform_7(%arg0: i32) -> (i32, i32) {
    %c0_i32 = arith.constant 0 : i32
    %c0_i32_0 = arith.constant 0 : i32
    %c0_i32_1 = arith.constant 0 : i32
    return %c0_i32, %c0_i32_0 : i32, i32
  }
}

</mosaic_0001>

<llo_original>
// kernel: basic_block_forward.1
$region0: #{basic_block_forward.1}
  #allocation0 [shape = 'u32[]', space=smem, size = 0x4, offset = 0x4, fixed_abs, tag = 'smem constant byte address 0x4 - core index']
  #allocation1 [shape = 'u32[144,128]{1,0:T(1,128)}', space=vmem, size = 0x12000, scoped, tag = 'internal scratch']
  #allocation2 [shape = 'f32[8,768]{1,0:T(8,128)}', space=vmem, size = 0x6000, scoped, tag = 'scratch operand']
  %s0 = inlined_call_operand.vmem [shape: f32[8,512], index: 0, kind: input, shape index: {}]
  %s1 = inlined_call_operand.vmem [shape: f32[3,8,24], index: 1, kind: input, shape index: {}]
  %s2 = inlined_call_operand.vmem [shape: f32[8,1], index: 2, kind: input, shape index: {}]
  %s3 = inlined_call_operand.vmem [shape: f32[8,1], index: 3, kind: input, shape index: {}]
  %s4 = inlined_call_operand.vmem [shape: f32[3,8,24], index: 4, kind: input, shape index: {}]
  %s5 = inlined_call_operand.vmem [shape: f32[8,1], index: 5, kind: input, shape index: {}]
  %s6 = inlined_call_operand.vmem [shape: f32[8,1], index: 6, kind: input, shape index: {}]
  %s7 = inlined_call_operand.vmem [shape: f32[8,512], index: 7, kind: output, shape index: {}]
  %s8 = sld [smem:[#allocation0]]
  $region38: #{basic_block_forward.1} parent=0
    _
  %s10 = ssub.s32 1, %s8
  %s11 = scalar_select 0, %s10, %s8
  // Predicated region
  $region2: #{basic_block_forward.1} parent=0 // pred_check
    _
  $region3: #{basic_block_forward.1} parent=0 // pred_check_branch
    %13 = sbr.rel (0) target = $region5
  $region4: #{basic_block_forward.1} parent=0 // pred_region
    _
  $region5: #{basic_block_forward.1} parent=0 // pred_fallthru
    _
  // Predicated region
  $region6: #{basic_block_forward.1} parent=0 // pred_check
    _
  $region7: #{basic_block_forward.1} parent=0 // pred_check_branch
    %15 = sbr.rel (0) target = $region9
  $region8: #{basic_block_forward.1} parent=0 // pred_region
    _
  $region9: #{basic_block_forward.1} parent=0 // pred_fallthru
    _
  // Predicated region
  $region10: #{basic_block_forward.1} parent=0 // pred_check
    _
  $region11: #{basic_block_forward.1} parent=0 // pred_check_branch
    %17 = sbr.rel (0) target = $region13
  $region12: #{basic_block_forward.1} parent=0 // pred_region
    _
  $region13: #{basic_block_forward.1} parent=0 // pred_fallthru
    _
  // Predicated region
  $region14: #{basic_block_forward.1} parent=0 // pred_check
    _
  $region15: #{basic_block_forward.1} parent=0 // pred_check_branch
    %19 = sbr.rel (0) target = $region17
  $region16: #{basic_block_forward.1} parent=0 // pred_region
    _
  $region17: #{basic_block_forward.1} parent=0 // pred_fallthru
    _
  // Predicated region
  $region18: #{basic_block_forward.1} parent=0 // pred_check
    _
  $region19: #{basic_block_forward.1} parent=0 // pred_check_branch
    %21 = sbr.rel (0) target = $region21
  $region20: #{basic_block_forward.1} parent=0 // pred_region
    _
  $region21: #{basic_block_forward.1} parent=0 // pred_fallthru
    _
  // Predicated region
  $region22: #{basic_block_forward.1} parent=0 // pred_check
    _
  $region23: #{basic_block_forward.1} parent=0 // pred_check_branch
    %23 = sbr.rel (0) target = $region25
  $region24: #{basic_block_forward.1} parent=0 // pred_region
    _
  $region25: #{basic_block_forward.1} parent=0 // pred_fallthru
    _
  // Predicated region
  $region26: #{basic_block_forward.1} parent=0 // pred_check
    _
  $region27: #{basic_block_forward.1} parent=0 // pred_check_branch
    %25 = sbr.rel (0) target = $region29
  $region28: #{basic_block_forward.1} parent=0 // pred_region
    _
  $region29: #{basic_block_forward.1} parent=0 // pred_fallthru
    _
  %v26 = vlaneseq
  %v27 = vand.u32 %v26, 127
  %v28 = vadd.s32 %v27, 128
  %v29 = vadd.s32 %v27, 256
  %v30 = vadd.s32 %v27, 384
  %v31 = vand.u32 %v27, 255
  %v32 = vand.u32 %v28, 255
  %v33 = vand.u32 %v29, 255
  %v34 = vand.u32 %v30, 255
  %v35 = vand.u32 %v31, 15
  %v36 = vand.u32 %v32, 15
  %v37 = vand.u32 %v33, 15
  %v38 = vand.u32 %v34, 15
  %v39 = vshra.s32 %v31, 4
  %v40 = vshra.s32 %v32, 4
  %v41 = vshra.s32 %v33, 4
  %v42 = vshra.s32 %v34, 4
  %vm43 = vcmp.ge.s32.totalorder %v35, 1
  %vm44 = vcmp.ge.s32.totalorder %v36, 1
  %vm45 = vcmp.ge.s32.totalorder %v37, 1
  %vm46 = vcmp.ge.s32.totalorder %v38, 1
  %v47 = vsel %vm43, 1, 0
  %v48 = vsel %vm44, 1, 0
  %v49 = vsel %vm45, 1, 0
  %v50 = vsel %vm46, 1, 0
  %v51 = vcvt.s32.f32 %v47
  %v52 = vcvt.s32.f32 %v48
  %v53 = vcvt.s32.f32 %v49
  %v54 = vcvt.s32.f32 %v50
  %vm55 = vcmp.le.s32.totalorder %v35, 14
  %vm56 = vcmp.le.s32.totalorder %v36, 14
  %vm57 = vcmp.le.s32.totalorder %v37, 14
  %vm58 = vcmp.le.s32.totalorder %v38, 14
  %v59 = vsel %vm55, 1, 0
  %v60 = vsel %vm56, 1, 0
  %v61 = vsel %vm57, 1, 0
  %v62 = vsel %vm58, 1, 0
  %v63 = vcvt.s32.f32 %v59
  %v64 = vcvt.s32.f32 %v60
  %v65 = vcvt.s32.f32 %v61
  %v66 = vcvt.s32.f32 %v62
  %vm67 = vcmp.ge.s32.totalorder %v39, 1
  %vm68 = vcmp.ge.s32.totalorder %v40, 1
  %vm69 = vcmp.ge.s32.totalorder %v41, 1
  %vm70 = vcmp.ge.s32.totalorder %v42, 1
  %v71 = vsel %vm67, 1, 0
  %v72 = vsel %vm68, 1, 0
  %v73 = vsel %vm69, 1, 0
  %v74 = vsel %vm70, 1, 0
  %v75 = vcvt.s32.f32 %v71
  %v76 = vcvt.s32.f32 %v72
  %v77 = vcvt.s32.f32 %v73
  %v78 = vcvt.s32.f32 %v74
  %vm79 = vcmp.le.s32.totalorder %v39, 14
  %vm80 = vcmp.le.s32.totalorder %v40, 14
  %vm81 = vcmp.le.s32.totalorder %v41, 14
  %vm82 = vcmp.le.s32.totalorder %v42, 14
  %v83 = vsel %vm79, 1, 0
  %v84 = vsel %vm80, 1, 0
  %v85 = vsel %vm81, 1, 0
  %v86 = vsel %vm82, 1, 0
  %v87 = vcvt.s32.f32 %v83
  %v88 = vcvt.s32.f32 %v84
  %v89 = vcvt.s32.f32 %v85
  %v90 = vcvt.s32.f32 %v86
  %91 = vst [vmem:[#allocation2] sm:$0xff] 0.0
  %92 = vst [vmem:[#allocation2 + $0x28] sm:$0xff] 0.0
  %v93 = vld [vmem:[%s0] sm:$0xff]
  %v94 = vld [vmem:[%s0 + $0x8] sm:$0xff]
  %v95 = vld [vmem:[%s0 + $0x10] sm:$0xff]
  %v96 = vld [vmem:[%s0 + $0x18] sm:$0xff]
  %97 = vst [vmem:[#allocation2 + $0x8] sm:$0xff] %v93
  %98 = vst [vmem:[#allocation2 + $0x10] sm:$0xff] %v94
  %99 = vst [vmem:[#allocation2 + $0x18] sm:$0xff] %v95
  %100 = vst [vmem:[#allocation2 + $0x20] sm:$0xff] %v96
  %v101 = vld [vmem:[#allocation2] sm:$0xff]
  %v102 = vld [vmem:[#allocation2 + $0x8] sm:$0xff]
  %v103 = vld [vmem:[#allocation2 + $0x10] sm:$0xff]
  %v104 = vld [vmem:[#allocation2 + $0x18] sm:$0xff]
  %v105 = vld [vmem:[#allocation2 + $0x20] sm:$0xff]
  %110 = vrot.lane.b32.xlu0 %v51, 111
  %v111 = vpop.permute.xlu0 %110
  %112 = vrot.lane.b32.xlu0 %v52, 111
  %v113 = vpop.permute.xlu0 %112
  %114 = vrot.lane.b32.xlu0 %v53, 111
  %v115 = vpop.permute.xlu0 %114
  %116 = vrot.lane.b32.xlu0 %v54, 111
  %v117 = vpop.permute.xlu0 %116
  %vm118 = vcmask 908288
  %v119 = vsel %vm118, %v111, %v113
  %v120 = vsel %vm118, %v113, %v115
  %v121 = vsel %vm118, %v115, %v117
  %v127 = vmul.f32 %v101, %v111
  %v128 = vmul.f32 %v102, %v119
  %v129 = vmul.f32 %v103, %v120
  %v130 = vmul.f32 %v104, %v121
  %v131 = vmul.f32 %v105, %v117
  %136 = vrot.lane.b32.xlu0 %v63, 113
  %v137 = vpop.permute.xlu0 %136
  %138 = vrot.lane.b32.xlu0 %v64, 113
  %v139 = vpop.permute.xlu0 %138
  %140 = vrot.lane.b32.xlu0 %v65, 113
  %v141 = vpop.permute.xlu0 %140
  %142 = vrot.lane.b32.xlu0 %v66, 113
  %v143 = vpop.permute.xlu0 %142
  %vm144 = vcmask 924672
  %v145 = vsel %vm144, %v137, %v139
  %v146 = vsel %vm144, %v139, %v141
  %v147 = vsel %vm144, %v141, %v143
  %v153 = vmul.f32 %v101, %v137
  %v154 = vmul.f32 %v102, %v145
  %v155 = vmul.f32 %v103, %v146
  %v156 = vmul.f32 %v104, %v147
  %v157 = vmul.f32 %v105, %v143
  %163 = vrot.lane.b32.xlu0 %v101, 127
  %v164 = vpop.permute.xlu0 %163
  %165 = vrot.lane.b32.xlu0 %v102, 127
  %v166 = vpop.permute.xlu0 %165
  %167 = vrot.lane.b32.xlu0 %v103, 127
  %v168 = vpop.permute.xlu0 %167
  %169 = vrot.lane.b32.xlu0 %v104, 127
  %v170 = vpop.permute.xlu0 %169
  %171 = vrot.lane.b32.xlu0 %v105, 127
  %v172 = vpop.permute.xlu0 %171
  %vm173 = vcmask 1039360
  %v174 = vsel %vm173, %v164, %v166
  %v175 = vsel %vm173, %v166, %v168
  %v176 = vsel %vm173, %v168, %v170
  %v177 = vsel %vm173, %v170, %v172
  %183 = vrot.lane.b32.xlu0 %v153, 126
  %v184 = vpop.permute.xlu0 %183
  %185 = vrot.lane.b32.xlu0 %v154, 126
  %v186 = vpop.permute.xlu0 %185
  %187 = vrot.lane.b32.xlu0 %v155, 126
  %v188 = vpop.permute.xlu0 %187
  %189 = vrot.lane.b32.xlu0 %v156, 126
  %v190 = vpop.permute.xlu0 %189
  %191 = vrot.lane.b32.xlu0 %v157, 126
  %v192 = vpop.permute.xlu0 %191
  %vm193 = vcmask 1031168
  %v194 = vsel %vm193, %v184, %v186
  %v195 = vsel %vm193, %v186, %v188
  %v196 = vsel %vm193, %v188, %v190
  %v197 = vsel %vm193, %v190, %v192
  %v198 = vld [vmem:[%s1] sm:$0xff]
  %204 = vrot.lane.b32.xlu0 %v127, 17
  %v205 = vpop.permute.xlu0 %204
  %206 = vrot.lane.b32.xlu0 %v128, 17
  %v207 = vpop.permute.xlu0 %206
  %208 = vrot.lane.b32.xlu0 %v129, 17
  %v209 = vpop.permute.xlu0 %208
  %210 = vrot.lane.b32.xlu0 %v130, 17
  %v211 = vpop.permute.xlu0 %210
  %212 = vrot.lane.b32.xlu0 %v131, 17
  %v213 = vpop.permute.xlu0 %212
  %214 = vrot.lane.b32.xlu0 %v174, 17
  %v215 = vpop.permute.xlu0 %214
  %216 = vrot.lane.b32.xlu0 %v175, 17
  %v217 = vpop.permute.xlu0 %216
  %218 = vrot.lane.b32.xlu0 %v176, 17
  %v219 = vpop.permute.xlu0 %218
  %220 = vrot.lane.b32.xlu0 %v177, 17
  %v221 = vpop.permute.xlu0 %220
  %222 = vrot.lane.b32.xlu0 %v172, 17
  %v223 = vpop.permute.xlu0 %222
  %224 = vrot.lane.b32.xlu0 %v194, 17
  %v225 = vpop.permute.xlu0 %224
  %226 = vrot.lane.b32.xlu0 %v195, 17
  %v227 = vpop.permute.xlu0 %226
  %228 = vrot.lane.b32.xlu0 %v196, 17
  %v229 = vpop.permute.xlu0 %228
  %230 = vrot.lane.b32.xlu0 %v197, 17
  %v231 = vpop.permute.xlu0 %230
  %232 = vrot.lane.b32.xlu0 %v192, 17
  %v233 = vpop.permute.xlu0 %232
  %vm234 = vcmask 138240
  %v235 = vsel %vm234, %v205, %v207
  %v236 = vsel %vm234, %v207, %v209
  %v237 = vsel %vm234, %v209, %v211
  %v238 = vsel %vm234, %v211, %v213
  %v239 = vsel %vm234, %v215, %v217
  %v240 = vsel %vm234, %v217, %v219
  %v241 = vsel %vm234, %v219, %v221
  %v242 = vsel %vm234, %v221, %v223
  %v243 = vsel %vm234, %v225, %v227
  %v244 = vsel %vm234, %v227, %v229
  %v245 = vsel %vm234, %v229, %v231
  %v246 = vsel %vm234, %v231, %v233
  %vm259 = vcmask 195584
  %v261 = vsel %vm259, %v198, 0
  %263 = vmatprep.subr.mxu0 0.0
  %264 = vmatpush1.msra.mxu0 0.0
  %265 = vmatprep.subr.mxu0 0.0
  %266 = vmatpush1.msra.mxu0 0.0
  %267 = vmatprep.subr.mxu0 0.0
  %268 = vmatpush1.msra.mxu0 0.0
  %269 = vmatprep.subr.mxu0 0.0
  %270 = vmatpush1.msra.mxu0 0.0
  %271 = vmatprep.subr.mxu0 0.0
  %272 = vmatpush1.msra.mxu0 0.0
  %273 = vmatprep.subr.mxu0 0.0
  %274 = vmatpush1.msra.mxu0 0.0
  %275 = vmatprep.subr.mxu0 0.0
  %276 = vmatpush1.msra.mxu0 0.0
  %277 = vmatprep.subr.mxu0 0.0
  %278 = vmatpush1.msra.mxu0 0.0
  %279 = vmatprep.subr.mxu0 0.0
  %280 = vmatpush1.msra.mxu0 0.0
  %281 = vmatprep.subr.mxu0 0.0
  %282 = vmatpush1.msra.mxu0 0.0
  %283 = vmatprep.subr.mxu0 0.0
  %284 = vmatpush1.msra.mxu0 0.0
  %285 = vmatprep.subr.mxu0 0.0
  %286 = vmatpush1.msra.mxu0 0.0
  %287 = vmatprep.subr.mxu0 0.0
  %288 = vmatpush1.msra.mxu0 0.0
  %289 = vmatprep.subr.mxu0 %v244
  %290 = vmatpush1.msra.mxu0 %v243
  %291 = vmatprep.subr.mxu0 %v240
  %292 = vmatpush1.msra.mxu0 %v239
  %293 = vmatprep.subr.mxu0 %v236
  %294 = vmatpush1.msra.mxu0 %v235
  %295 = vmatprep.subr.mxu0 0.0
  %296 = vmatpush2.msra.mxu0 0.0
  %297 = vmatprep.subr.mxu0 0.0
  %298 = vmatpush2.msra.mxu0 0.0
  %299 = vmatprep.subr.mxu0 0.0
  %300 = vmatpush2.msra.mxu0 0.0
  %301 = vmatprep.subr.mxu0 0.0
  %302 = vmatpush2.msra.mxu0 0.0
  %303 = vmatprep.subr.mxu0 0.0
  %304 = vmatpush2.msra.mxu0 0.0
  %305 = vmatprep.subr.mxu0 0.0
  %306 = vmatpush2.msra.mxu0 0.0
  %307 = vmatprep.subr.mxu0 0.0
  %308 = vmatpush2.msra.mxu0 0.0
  %309 = vmatprep.subr.mxu0 0.0
  %310 = vmatpush2.msra.mxu0 0.0
  %311 = vmatprep.subr.mxu0 0.0
  %312 = vmatpush2.msra.mxu0 0.0
  %313 = vmatprep.subr.mxu0 0.0
  %314 = vmatpush2.msra.mxu0 0.0
  %315 = vmatprep.subr.mxu0 0.0
  %316 = vmatpush2.msra.mxu0 0.0
  %317 = vmatprep.subr.mxu0 0.0
  %318 = vmatpush2.msra.mxu0 0.0
  %319 = vmatprep.subr.mxu0 0.0
  %320 = vmatpush2.msra.mxu0 0.0
  %321 = vmatprep.subr.mxu0 0.0
  %322 = vmatpush2.msra.mxu0 0.0
  %323 = vmatprep.subr.mxu0 0.0
  %324 = vmatpush2.msra.mxu0 0.0
  %325 = vmatprep.subr.mxu0 0.0
  %326 = vmatpush2.msra.mxu0 0.0
  %327 = vmatprep.mubr.f32.mxu0 0.0
  %328 = vmatmul.mubr.f32.gmra.mxu0 %v261
  %v329 = vpop.f32.mrf.mxu0
  %v330 = vadd.f32 0.0, %v329
  %v331 = vpop.f32.mrf.mxu0
  %v332 = vadd.f32 0.0, %v331
  %333 = vdwg.mxu0
  %334 = vmatprep.subr.mxu0 0.0
  %335 = vmatpush1.msra.mxu0 0.0
  %336 = vmatprep.subr.mxu0 0.0
  %337 = vmatpush1.msra.mxu0 0.0
  %338 = vmatprep.subr.mxu0 0.0
  %339 = vmatpush1.msra.mxu0 0.0
  %340 = vmatprep.subr.mxu0 0.0
  %341 = vmatpush1.msra.mxu0 0.0
  %342 = vmatprep.subr.mxu0 0.0
  %343 = vmatpush1.msra.mxu0 0.0
  %344 = vmatprep.subr.mxu0 0.0
  %345 = vmatpush1.msra.mxu0 0.0
  %346 = vmatprep.subr.mxu0 0.0
  %347 = vmatpush1.msra.mxu0 0.0
  %348 = vmatprep.subr.mxu0 0.0
  %349 = vmatpush1.msra.mxu0 0.0
  %350 = vmatprep.subr.mxu0 0.0
  %351 = vmatpush1.msra.mxu0 0.0
  %352 = vmatprep.subr.mxu0 0.0
  %353 = vmatpush1.msra.mxu0 0.0
  %354 = vmatprep.subr.mxu0 0.0
  %355 = vmatpush1.msra.mxu0 0.0
  %356 = vmatprep.subr.mxu0 0.0
  %357 = vmatpush1.msra.mxu0 0.0
  %358 = vmatprep.subr.mxu0 0.0
  %359 = vmatpush1.msra.mxu0 0.0
  %360 = vmatprep.subr.mxu0 %v246
  %361 = vmatpush1.msra.mxu0 %v245
  %362 = vmatprep.subr.mxu0 %v242
  %363 = vmatpush1.msra.mxu0 %v241
  %364 = vmatprep.subr.mxu0 %v238
  %365 = vmatpush1.msra.mxu0 %v237
  %366 = vmatprep.subr.mxu0 0.0
  %367 = vmatpush2.msra.mxu0 0.0
  %368 = vmatprep.subr.mxu0 0.0
  %369 = vmatpush2.msra.mxu0 0.0
  %370 = vmatprep.subr.mxu0 0.0
  %371 = vmatpush2.msra.mxu0 0.0
  %372 = vmatprep.subr.mxu0 0.0
  %373 = vmatpush2.msra.mxu0 0.0
  %374 = vmatprep.subr.mxu0 0.0
  %375 = vmatpush2.msra.mxu0 0.0
  %376 = vmatprep.subr.mxu0 0.0
  %377 = vmatpush2.msra.mxu0 0.0
  %378 = vmatprep.subr.mxu0 0.0
  %379 = vmatpush2.msra.mxu0 0.0
  %380 = vmatprep.subr.mxu0 0.0
  %381 = vmatpush2.msra.mxu0 0.0
  %382 = vmatprep.subr.mxu0 0.0
  %383 = vmatpush2.msra.mxu0 0.0
  %384 = vmatprep.subr.mxu0 0.0
  %385 = vmatpush2.msra.mxu0 0.0
  %386 = vmatprep.subr.mxu0 0.0
  %387 = vmatpush2.msra.mxu0 0.0
  %388 = vmatprep.subr.mxu0 0.0
  %389 = vmatpush2.msra.mxu0 0.0
  %390 = vmatprep.subr.mxu0 0.0
  %391 = vmatpush2.msra.mxu0 0.0
  %392 = vmatprep.subr.mxu0 0.0
  %393 = vmatpush2.msra.mxu0 0.0
  %394 = vmatprep.subr.mxu0 0.0
  %395 = vmatpush2.msra.mxu0 0.0
  %396 = vmatprep.subr.mxu0 0.0
  %397 = vmatpush2.msra.mxu0 0.0
  %398 = vmatprep.mubr.f32.mxu0 0.0
  %399 = vmatmul.mubr.f32.gmra.mxu0 %v261
  %v400 = vpop.f32.mrf.mxu0
  %v401 = vadd.f32 0.0, %v400
  %v402 = vpop.f32.mrf.mxu0
  %v403 = vadd.f32 0.0, %v402
  %404 = vdwg.mxu0
  %v405 = vmul.f32 %v330, %v75
  %v406 = vmul.f32 %v332, %v76
  %v407 = vmul.f32 %v401, %v77
  %v408 = vmul.f32 %v403, %v78
  %v409 = vadd.f32 %v405, 0.0
  %v410 = vadd.f32 %v406, 0.0
  %v411 = vadd.f32 %v407, 0.0
  %v412 = vadd.f32 %v408, 0.0
  %413 = vrot.lane.b32.xlu0 %v51, 127
  %v414 = vpop.permute.xlu0 %413
  %415 = vrot.lane.b32.xlu0 %v52, 127
  %v416 = vpop.permute.xlu0 %415
  %417 = vrot.lane.b32.xlu0 %v53, 127
  %v418 = vpop.permute.xlu0 %417
  %419 = vrot.lane.b32.xlu0 %v54, 127
  %v420 = vpop.permute.xlu0 %419
  %v421 = vsel %vm173, %v414, %v416
  %v422 = vsel %vm173, %v416, %v418
  %v423 = vsel %vm173, %v418, %v420
  %v429 = vmul.f32 %v101, %v414
  %v430 = vmul.f32 %v102, %v421
  %v431 = vmul.f32 %v103, %v422
  %v432 = vmul.f32 %v104, %v423
  %v433 = vmul.f32 %v105, %v420
  %v434 = vld [vmem:[#allocation2 + $0x8] sm:$0xff]
  %v435 = vld [vmem:[#allocation2 + $0x10] sm:$0xff]
  %v436 = vld [vmem:[#allocation2 + $0x18] sm:$0xff]
  %v437 = vld [vmem:[#allocation2 + $0x20] sm:$0xff]
  %v438 = vld [vmem:[#allocation2 + $0x28] sm:$0xff]
  %439 = vrot.lane.b32.xlu0 %v63, 1
  %v440 = vpop.permute.xlu0 %439
  %441 = vrot.lane.b32.xlu0 %v64, 1
  %v442 = vpop.permute.xlu0 %441
  %443 = vrot.lane.b32.xlu0 %v65, 1
  %v444 = vpop.permute.xlu0 %443
  %445 = vrot.lane.b32.xlu0 %v66, 1
  %v446 = vpop.permute.xlu0 %445
  %vm447 = vcmask 7168
  %v448 = vsel %vm447, %v440, %v442
  %v449 = vsel %vm447, %v442, %v444
  %v450 = vsel %vm447, %v444, %v446
  %v456 = vmul.f32 %v434, %v440
  %v457 = vmul.f32 %v435, %v448
  %v458 = vmul.f32 %v436, %v449
  %v459 = vmul.f32 %v437, %v450
  %v460 = vmul.f32 %v438, %v446
  %466 = vrot.lane.b32.xlu0 %v456, 126
  %v467 = vpop.permute.xlu0 %466
  %468 = vrot.lane.b32.xlu0 %v457, 126
  %v469 = vpop.permute.xlu0 %468
  %470 = vrot.lane.b32.xlu0 %v458, 126
  %v471 = vpop.permute.xlu0 %470
  %472 = vrot.lane.b32.xlu0 %v459, 126
  %v473 = vpop.permute.xlu0 %472
  %474 = vrot.lane.b32.xlu0 %v460, 126
  %v475 = vpop.permute.xlu0 %474
  %v476 = vsel %vm193, %v467, %v469
  %v477 = vsel %vm193, %v469, %v471
  %v478 = vsel %vm193, %v471, %v473
  %v479 = vsel %vm193, %v473, %v475
  %s480 = scalar_lea.vmem %s1, 8
  %v481 = vld [vmem:[%s480] sm:$0xff]
  %487 = vrot.lane.b32.xlu0 %v429, 1
  %v488 = vpop.permute.xlu0 %487
  %489 = vrot.lane.b32.xlu0 %v430, 1
  %v490 = vpop.permute.xlu0 %489
  %491 = vrot.lane.b32.xlu0 %v431, 1
  %v492 = vpop.permute.xlu0 %491
  %493 = vrot.lane.b32.xlu0 %v432, 1
  %v494 = vpop.permute.xlu0 %493
  %495 = vrot.lane.b32.xlu0 %v433, 1
  %v496 = vpop.permute.xlu0 %495
  %497 = vrot.lane.b32.xlu0 %v166, 1
  %v498 = vpop.permute.xlu0 %497
  %499 = vrot.lane.b32.xlu0 %v175, 1
  %v500 = vpop.permute.xlu0 %499
  %501 = vrot.lane.b32.xlu0 %v176, 1
  %v502 = vpop.permute.xlu0 %501
  %503 = vrot.lane.b32.xlu0 %v177, 1
  %v504 = vpop.permute.xlu0 %503
  %505 = vrot.lane.b32.xlu0 %v172, 1
  %v506 = vpop.permute.xlu0 %505
  %507 = vrot.lane.b32.xlu0 %v467, 1
  %v508 = vpop.permute.xlu0 %507
  %509 = vrot.lane.b32.xlu0 %v476, 1
  %v510 = vpop.permute.xlu0 %509
  %511 = vrot.lane.b32.xlu0 %v477, 1
  %v512 = vpop.permute.xlu0 %511
  %513 = vrot.lane.b32.xlu0 %v478, 1
  %v514 = vpop.permute.xlu0 %513
  %515 = vrot.lane.b32.xlu0 %v479, 1
  %v516 = vpop.permute.xlu0 %515
  %v517 = vsel %vm447, %v488, %v490
  %v518 = vsel %vm447, %v490, %v492
  %v519 = vsel %vm447, %v492, %v494
  %v520 = vsel %vm447, %v494, %v496
  %v521 = vsel %vm447, %v498, %v500
  %v522 = vsel %vm447, %v500, %v502
  %v523 = vsel %vm447, %v502, %v504
  %v524 = vsel %vm447, %v504, %v506
  %v525 = vsel %vm447, %v508, %v510
  %v526 = vsel %vm447, %v510, %v512
  %v527 = vsel %vm447, %v512, %v514
  %v528 = vsel %vm447, %v514, %v516
  %v542 = vsel %vm259, %v481, 0
  %544 = vmatprep.subr.mxu0 0.0
  %545 = vmatpush1.msra.mxu0 0.0
  %546 = vmatprep.subr.mxu0 0.0
  %547 = vmatpush1.msra.mxu0 0.0
  %548 = vmatprep.subr.mxu0 0.0
  %549 = vmatpush1.msra.mxu0 0.0
  %550 = vmatprep.subr.mxu0 0.0
  %551 = vmatpush1.msra.mxu0 0.0
  %552 = vmatprep.subr.mxu0 0.0
  %553 = vmatpush1.msra.mxu0 0.0
  %554 = vmatprep.subr.mxu0 0.0
  %555 = vmatpush1.msra.mxu0 0.0
  %556 = vmatprep.subr.mxu0 0.0
  %557 = vmatpush1.msra.mxu0 0.0
  %558 = vmatprep.subr.mxu0 0.0
  %559 = vmatpush1.msra.mxu0 0.0
  %560 = vmatprep.subr.mxu0 0.0
  %561 = vmatpush1.msra.mxu0 0.0
  %562 = vmatprep.subr.mxu0 0.0
  %563 = vmatpush1.msra.mxu0 0.0
  %564 = vmatprep.subr.mxu0 0.0
  %565 = vmatpush1.msra.mxu0 0.0
  %566 = vmatprep.subr.mxu0 0.0
  %567 = vmatpush1.msra.mxu0 0.0
  %568 = vmatprep.subr.mxu0 0.0
  %569 = vmatpush1.msra.mxu0 0.0
  %570 = vmatprep.subr.mxu0 %v526
  %571 = vmatpush1.msra.mxu0 %v525
  %572 = vmatprep.subr.mxu0 %v522
  %573 = vmatpush1.msra.mxu0 %v521
  %574 = vmatprep.subr.mxu0 %v518
  %575 = vmatpush1.msra.mxu0 %v517
  %576 = vmatprep.subr.mxu0 0.0
  %577 = vmatpush2.msra.mxu0 0.0
  %578 = vmatprep.subr.mxu0 0.0
  %579 = vmatpush2.msra.mxu0 0.0
  %580 = vmatprep.subr.mxu0 0.0
  %581 = vmatpush2.msra.mxu0 0.0
  %582 = vmatprep.subr.mxu0 0.0
  %583 = vmatpush2.msra.mxu0 0.0
  %584 = vmatprep.subr.mxu0 0.0
  %585 = vmatpush2.msra.mxu0 0.0
  %586 = vmatprep.subr.mxu0 0.0
  %587 = vmatpush2.msra.mxu0 0.0
  %588 = vmatprep.subr.mxu0 0.0
  %589 = vmatpush2.msra.mxu0 0.0
  %590 = vmatprep.subr.mxu0 0.0
  %591 = vmatpush2.msra.mxu0 0.0
  %592 = vmatprep.subr.mxu0 0.0
  %593 = vmatpush2.msra.mxu0 0.0
  %594 = vmatprep.subr.mxu0 0.0
  %595 = vmatpush2.msra.mxu0 0.0
  %596 = vmatprep.subr.mxu0 0.0
  %597 = vmatpush2.msra.mxu0 0.0
  %598 = vmatprep.subr.mxu0 0.0
  %599 = vmatpush2.msra.mxu0 0.0
  %600 = vmatprep.subr.mxu0 0.0
  %601 = vmatpush2.msra.mxu0 0.0
  %602 = vmatprep.subr.mxu0 0.0
  %603 = vmatpush2.msra.mxu0 0.0
  %604 = vmatprep.subr.mxu0 0.0
  %605 = vmatpush2.msra.mxu0 0.0
  %606 = vmatprep.subr.mxu0 0.0
  %607 = vmatpush2.msra.mxu0 0.0
  %608 = vmatprep.mubr.f32.mxu0 0.0
  %609 = vmatmul.mubr.f32.gmra.mxu0 %v542
  %v610 = vpop.f32.mrf.mxu0
  %v611 = vadd.f32 0.0, %v610
  %v612 = vpop.f32.mrf.mxu0
  %v613 = vadd.f32 0.0, %v612
  %614 = vdwg.mxu0
  %615 = vmatprep.subr.mxu0 0.0
  %616 = vmatpush1.msra.mxu0 0.0
  %617 = vmatprep.subr.mxu0 0.0
  %618 = vmatpush1.msra.mxu0 0.0
  %619 = vmatprep.subr.mxu0 0.0
  %620 = vmatpush1.msra.mxu0 0.0
  %621 = vmatprep.subr.mxu0 0.0
  %622 = vmatpush1.msra.mxu0 0.0
  %623 = vmatprep.subr.mxu0 0.0
  %624 = vmatpush1.msra.mxu0 0.0
  %625 = vmatprep.subr.mxu0 0.0
  %626 = vmatpush1.msra.mxu0 0.0
  %627 = vmatprep.subr.mxu0 0.0
  %628 = vmatpush1.msra.mxu0 0.0
  %629 = vmatprep.subr.mxu0 0.0
  %630 = vmatpush1.msra.mxu0 0.0
  %631 = vmatprep.subr.mxu0 0.0
  %632 = vmatpush1.msra.mxu0 0.0
  %633 = vmatprep.subr.mxu0 0.0
  %634 = vmatpush1.msra.mxu0 0.0
  %635 = vmatprep.subr.mxu0 0.0
  %636 = vmatpush1.msra.mxu0 0.0
  %637 = vmatprep.subr.mxu0 0.0
  %638 = vmatpush1.msra.mxu0 0.0
  %639 = vmatprep.subr.mxu0 0.0
  %640 = vmatpush1.msra.mxu0 0.0
  %641 = vmatprep.subr.mxu0 %v528
  %642 = vmatpush1.msra.mxu0 %v527
  %643 = vmatprep.subr.mxu0 %v524
  %644 = vmatpush1.msra.mxu0 %v523
  %645 = vmatprep.subr.mxu0 %v520
  %646 = vmatpush1.msra.mxu0 %v519
  %647 = vmatprep.subr.mxu0 0.0
  %648 = vmatpush2.msra.mxu0 0.0
  %649 = vmatprep.subr.mxu0 0.0
  %650 = vmatpush2.msra.mxu0 0.0
  %651 = vmatprep.subr.mxu0 0.0
  %652 = vmatpush2.msra.mxu0 0.0
  %653 = vmatprep.subr.mxu0 0.0
  %654 = vmatpush2.msra.mxu0 0.0
  %655 = vmatprep.subr.mxu0 0.0
  %656 = vmatpush2.msra.mxu0 0.0
  %657 = vmatprep.subr.mxu0 0.0
  %658 = vmatpush2.msra.mxu0 0.0
  %659 = vmatprep.subr.mxu0 0.0
  %660 = vmatpush2.msra.mxu0 0.0
  %661 = vmatprep.subr.mxu0 0.0
  %662 = vmatpush2.msra.mxu0 0.0
  %663 = vmatprep.subr.mxu0 0.0
  %664 = vmatpush2.msra.mxu0 0.0
  %665 = vmatprep.subr.mxu0 0.0
  %666 = vmatpush2.msra.mxu0 0.0
  %667 = vmatprep.subr.mxu0 0.0
  %668 = vmatpush2.msra.mxu0 0.0
  %669 = vmatprep.subr.mxu0 0.0
  %670 = vmatpush2.msra.mxu0 0.0
  %671 = vmatprep.subr.mxu0 0.0
  %672 = vmatpush2.msra.mxu0 0.0
  %673 = vmatprep.subr.mxu0 0.0
  %674 = vmatpush2.msra.mxu0 0.0
  %675 = vmatprep.subr.mxu0 0.0
  %676 = vmatpush2.msra.mxu0 0.0
  %677 = vmatprep.subr.mxu0 0.0
  %678 = vmatpush2.msra.mxu0 0.0
  %679 = vmatprep.mubr.f32.mxu0 0.0
  %680 = vmatmul.mubr.f32.gmra.mxu0 %v542
  %v681 = vpop.f32.mrf.mxu0
  %v682 = vadd.f32 0.0, %v681
  %v683 = vpop.f32.mrf.mxu0
  %v684 = vadd.f32 0.0, %v683
  %685 = vdwg.mxu0
  %v686 = vadd.f32 %v409, %v611
  %v687 = vadd.f32 %v410, %v613
  %v688 = vadd.f32 %v411, %v682
  %v689 = vadd.f32 %v412, %v684
  %690 = vrot.lane.b32.xlu0 %v51, 15
  %v691 = vpop.permute.xlu0 %690
  %692 = vrot.lane.b32.xlu0 %v52, 15
  %v693 = vpop.permute.xlu0 %692
  %694 = vrot.lane.b32.xlu0 %v53, 15
  %v695 = vpop.permute.xlu0 %694
  %696 = vrot.lane.b32.xlu0 %v54, 15
  %v697 = vpop.permute.xlu0 %696
  %vm698 = vcmask 121856
  %v699 = vsel %vm698, %v691, %v693
  %v700 = vsel %vm698, %v693, %v695
  %v701 = vsel %vm698, %v695, %v697
  %v707 = vmul.f32 %v434, %v691
  %v708 = vmul.f32 %v435, %v699
  %v709 = vmul.f32 %v436, %v700
  %v710 = vmul.f32 %v437, %v701
  %v711 = vmul.f32 %v438, %v697
  %712 = vrot.lane.b32.xlu0 %v63, 17
  %v713 = vpop.permute.xlu0 %712
  %714 = vrot.lane.b32.xlu0 %v64, 17
  %v715 = vpop.permute.xlu0 %714
  %716 = vrot.lane.b32.xlu0 %v65, 17
  %v717 = vpop.permute.xlu0 %716
  %718 = vrot.lane.b32.xlu0 %v66, 17
  %v719 = vpop.permute.xlu0 %718
  %v720 = vsel %vm234, %v713, %v715
  %v721 = vsel %vm234, %v715, %v717
  %v722 = vsel %vm234, %v717, %v719
  %v728 = vmul.f32 %v434, %v713
  %v729 = vmul.f32 %v435, %v720
  %v730 = vmul.f32 %v436, %v721
  %v731 = vmul.f32 %v437, %v722
  %v732 = vmul.f32 %v438, %v719
  %738 = vrot.lane.b32.xlu0 %v434, 127
  %v739 = vpop.permute.xlu0 %738
  %740 = vrot.lane.b32.xlu0 %v435, 127
  %v741 = vpop.permute.xlu0 %740
  %742 = vrot.lane.b32.xlu0 %v436, 127
  %v743 = vpop.permute.xlu0 %742
  %744 = vrot.lane.b32.xlu0 %v437, 127
  %v745 = vpop.permute.xlu0 %744
  %746 = vrot.lane.b32.xlu0 %v438, 127
  %v747 = vpop.permute.xlu0 %746
  %v748 = vsel %vm173, %v739, %v741
  %v749 = vsel %vm173, %v741, %v743
  %v750 = vsel %vm173, %v743, %v745
  %v751 = vsel %vm173, %v745, %v747
  %757 = vrot.lane.b32.xlu0 %v728, 126
  %v758 = vpop.permute.xlu0 %757
  %759 = vrot.lane.b32.xlu0 %v729, 126
  %v760 = vpop.permute.xlu0 %759
  %761 = vrot.lane.b32.xlu0 %v730, 126
  %v762 = vpop.permute.xlu0 %761
  %763 = vrot.lane.b32.xlu0 %v731, 126
  %v764 = vpop.permute.xlu0 %763
  %765 = vrot.lane.b32.xlu0 %v732, 126
  %v766 = vpop.permute.xlu0 %765
  %v767 = vsel %vm193, %v758, %v760
  %v768 = vsel %vm193, %v760, %v762
  %v769 = vsel %vm193, %v762, %v764
  %v770 = vsel %vm193, %v764, %v766
  %s771 = scalar_lea.vmem %s1, 16
  %v772 = vld [vmem:[%s771] sm:$0xff]
  %778 = vrot.lane.b32.xlu0 %v707, 113
  %v779 = vpop.permute.xlu0 %778
  %780 = vrot.lane.b32.xlu0 %v708, 113
  %v781 = vpop.permute.xlu0 %780
  %782 = vrot.lane.b32.xlu0 %v709, 113
  %v783 = vpop.permute.xlu0 %782
  %784 = vrot.lane.b32.xlu0 %v710, 113
  %v785 = vpop.permute.xlu0 %784
  %786 = vrot.lane.b32.xlu0 %v711, 113
  %v787 = vpop.permute.xlu0 %786
  %788 = vrot.lane.b32.xlu0 %v748, 113
  %v789 = vpop.permute.xlu0 %788
  %790 = vrot.lane.b32.xlu0 %v749, 113
  %v791 = vpop.permute.xlu0 %790
  %792 = vrot.lane.b32.xlu0 %v750, 113
  %v793 = vpop.permute.xlu0 %792
  %794 = vrot.lane.b32.xlu0 %v751, 113
  %v795 = vpop.permute.xlu0 %794
  %796 = vrot.lane.b32.xlu0 %v747, 113
  %v797 = vpop.permute.xlu0 %796
  %798 = vrot.lane.b32.xlu0 %v767, 113
  %v799 = vpop.permute.xlu0 %798
  %800 = vrot.lane.b32.xlu0 %v768, 113
  %v801 = vpop.permute.xlu0 %800
  %802 = vrot.lane.b32.xlu0 %v769, 113
  %v803 = vpop.permute.xlu0 %802
  %804 = vrot.lane.b32.xlu0 %v770, 113
  %v805 = vpop.permute.xlu0 %804
  %806 = vrot.lane.b32.xlu0 %v766, 113
  %v807 = vpop.permute.xlu0 %806
  %v808 = vsel %vm144, %v779, %v781
  %v809 = vsel %vm144, %v781, %v783
  %v810 = vsel %vm144, %v783, %v785
  %v811 = vsel %vm144, %v785, %v787
  %v812 = vsel %vm144, %v789, %v791
  %v813 = vsel %vm144, %v791, %v793
  %v814 = vsel %vm144, %v793, %v795
  %v815 = vsel %vm144, %v795, %v797
  %v816 = vsel %vm144, %v799, %v801
  %v817 = vsel %vm144, %v801, %v803
  %v818 = vsel %vm144, %v803, %v805
  %v819 = vsel %vm144, %v805, %v807
  %v833 = vsel %vm259, %v772, 0
  %835 = vmatprep.subr.mxu0 0.0
  %836 = vmatpush1.msra.mxu0 0.0
  %837 = vmatprep.subr.mxu0 0.0
  %838 = vmatpush1.msra.mxu0 0.0
  %839 = vmatprep.subr.mxu0 0.0
  %840 = vmatpush1.msra.mxu0 0.0
  %841 = vmatprep.subr.mxu0 0.0
  %842 = vmatpush1.msra.mxu0 0.0
  %843 = vmatprep.subr.mxu0 0.0
  %844 = vmatpush1.msra.mxu0 0.0
  %845 = vmatprep.subr.mxu0 0.0
  %846 = vmatpush1.msra.mxu0 0.0
  %847 = vmatprep.subr.mxu0 0.0
  %848 = vmatpush1.msra.mxu0 0.0
  %849 = vmatprep.subr.mxu0 0.0
  %850 = vmatpush1.msra.mxu0 0.0
  %851 = vmatprep.subr.mxu0 0.0
  %852 = vmatpush1.msra.mxu0 0.0
  %853 = vmatprep.subr.mxu0 0.0
  %854 = vmatpush1.msra.mxu0 0.0
  %855 = vmatprep.subr.mxu0 0.0
  %856 = vmatpush1.msra.mxu0 0.0
  %857 = vmatprep.subr.mxu0 0.0
  %858 = vmatpush1.msra.mxu0 0.0
  %859 = vmatprep.subr.mxu0 0.0
  %860 = vmatpush1.msra.mxu0 0.0
  %861 = vmatprep.subr.mxu0 %v817
  %862 = vmatpush1.msra.mxu0 %v816
  %863 = vmatprep.subr.mxu0 %v813
  %864 = vmatpush1.msra.mxu0 %v812
  %865 = vmatprep.subr.mxu0 %v809
  %866 = vmatpush1.msra.mxu0 %v808
  %867 = vmatprep.subr.mxu0 0.0
  %868 = vmatpush2.msra.mxu0 0.0
  %869 = vmatprep.subr.mxu0 0.0
  %870 = vmatpush2.msra.mxu0 0.0
  %871 = vmatprep.subr.mxu0 0.0
  %872 = vmatpush2.msra.mxu0 0.0
  %873 = vmatprep.subr.mxu0 0.0
  %874 = vmatpush2.msra.mxu0 0.0
  %875 = vmatprep.subr.mxu0 0.0
  %876 = vmatpush2.msra.mxu0 0.0
  %877 = vmatprep.subr.mxu0 0.0
  %878 = vmatpush2.msra.mxu0 0.0
  %879 = vmatprep.subr.mxu0 0.0
  %880 = vmatpush2.msra.mxu0 0.0
  %881 = vmatprep.subr.mxu0 0.0
  %882 = vmatpush2.msra.mxu0 0.0
  %883 = vmatprep.subr.mxu0 0.0
  %884 = vmatpush2.msra.mxu0 0.0
  %885 = vmatprep.subr.mxu0 0.0
  %886 = vmatpush2.msra.mxu0 0.0
  %887 = vmatprep.subr.mxu0 0.0
  %888 = vmatpush2.msra.mxu0 0.0
  %889 = vmatprep.subr.mxu0 0.0
  %890 = vmatpush2.msra.mxu0 0.0
  %891 = vmatprep.subr.mxu0 0.0
  %892 = vmatpush2.msra.mxu0 0.0
  %893 = vmatprep.subr.mxu0 0.0
  %894 = vmatpush2.msra.mxu0 0.0
  %895 = vmatprep.subr.mxu0 0.0
  %896 = vmatpush2.msra.mxu0 0.0
  %897 = vmatprep.subr.mxu0 0.0
  %898 = vmatpush2.msra.mxu0 0.0
  %899 = vmatprep.mubr.f32.mxu0 0.0
  %900 = vmatmul.mubr.f32.gmra.mxu0 %v833
  %v901 = vpop.f32.mrf.mxu0
  %v902 = vadd.f32 0.0, %v901
  %v903 = vpop.f32.mrf.mxu0
  %v904 = vadd.f32 0.0, %v903
  %905 = vdwg.mxu0
  %906 = vmatprep.subr.mxu0 0.0
  %907 = vmatpush1.msra.mxu0 0.0
  %908 = vmatprep.subr.mxu0 0.0
  %909 = vmatpush1.msra.mxu0 0.0
  %910 = vmatprep.subr.mxu0 0.0
  %911 = vmatpush1.msra.mxu0 0.0
  %912 = vmatprep.subr.mxu0 0.0
  %913 = vmatpush1.msra.mxu0 0.0
  %914 = vmatprep.subr.mxu0 0.0
  %915 = vmatpush1.msra.mxu0 0.0
  %916 = vmatprep.subr.mxu0 0.0
  %917 = vmatpush1.msra.mxu0 0.0
  %918 = vmatprep.subr.mxu0 0.0
  %919 = vmatpush1.msra.mxu0 0.0
  %920 = vmatprep.subr.mxu0 0.0
  %921 = vmatpush1.msra.mxu0 0.0
  %922 = vmatprep.subr.mxu0 0.0
  %923 = vmatpush1.msra.mxu0 0.0
  %924 = vmatprep.subr.mxu0 0.0
  %925 = vmatpush1.msra.mxu0 0.0
  %926 = vmatprep.subr.mxu0 0.0
  %927 = vmatpush1.msra.mxu0 0.0
  %928 = vmatprep.subr.mxu0 0.0
  %929 = vmatpush1.msra.mxu0 0.0
  %930 = vmatprep.subr.mxu0 0.0
  %931 = vmatpush1.msra.mxu0 0.0
  %932 = vmatprep.subr.mxu0 %v819
  %933 = vmatpush1.msra.mxu0 %v818
  %934 = vmatprep.subr.mxu0 %v815
  %935 = vmatpush1.msra.mxu0 %v814
  %936 = vmatprep.subr.mxu0 %v811
  %937 = vmatpush1.msra.mxu0 %v810
  %938 = vmatprep.subr.mxu0 0.0
  %939 = vmatpush2.msra.mxu0 0.0
  %940 = vmatprep.subr.mxu0 0.0
  %941 = vmatpush2.msra.mxu0 0.0
  %942 = vmatprep.subr.mxu0 0.0
  %943 = vmatpush2.msra.mxu0 0.0
  %944 = vmatprep.subr.mxu0 0.0
  %945 = vmatpush2.msra.mxu0 0.0
  %946 = vmatprep.subr.mxu0 0.0
  %947 = vmatpush2.msra.mxu0 0.0
  %948 = vmatprep.subr.mxu0 0.0
  %949 = vmatpush2.msra.mxu0 0.0
  %950 = vmatprep.subr.mxu0 0.0
  %951 = vmatpush2.msra.mxu0 0.0
  %952 = vmatprep.subr.mxu0 0.0
  %953 = vmatpush2.msra.mxu0 0.0
  %954 = vmatprep.subr.mxu0 0.0
  %955 = vmatpush2.msra.mxu0 0.0
  %956 = vmatprep.subr.mxu0 0.0
  %957 = vmatpush2.msra.mxu0 0.0
  %958 = vmatprep.subr.mxu0 0.0
  %959 = vmatpush2.msra.mxu0 0.0
  %960 = vmatprep.subr.mxu0 0.0
  %961 = vmatpush2.msra.mxu0 0.0
  %962 = vmatprep.subr.mxu0 0.0
  %963 = vmatpush2.msra.mxu0 0.0
  %964 = vmatprep.subr.mxu0 0.0
  %965 = vmatpush2.msra.mxu0 0.0
  %966 = vmatprep.subr.mxu0 0.0
  %967 = vmatpush2.msra.mxu0 0.0
  %968 = vmatprep.subr.mxu0 0.0
  %969 = vmatpush2.msra.mxu0 0.0
  %970 = vmatprep.mubr.f32.mxu0 0.0
  %971 = vmatmul.mubr.f32.gmra.mxu0 %v833
  %v972 = vpop.f32.mrf.mxu0
  %v973 = vadd.f32 0.0, %v972
  %v974 = vpop.f32.mrf.mxu0
  %v975 = vadd.f32 0.0, %v974
  %976 = vdwg.mxu0
  %v977 = vmul.f32 %v902, %v87
  %v978 = vmul.f32 %v904, %v88
  %v979 = vmul.f32 %v973, %v89
  %v980 = vmul.f32 %v975, %v90
  %v981 = vadd.f32 %v686, %v977
  %v982 = vadd.f32 %v687, %v978
  %v983 = vadd.f32 %v688, %v979
  %v984 = vadd.f32 %v689, %v980
  %v985 = vld [vmem:[%s2] sm:$0xff]
  %v986 = vld [vmem:[%s3] sm:$0xff]
  %v987 = vadd.f32 %v981, %v982
  %v988 = vadd.f32 %v987, %v983
  %v989 = vadd.f32 %v988, %v984
  %990 = vadd.xlane.f32.xlu0 %v989
  %v991 = vpop.xlane.xlu0 %990
  %v992 = vmul.f32 %v991, 0.001953125
  %v993 = vmul.f32 %v981, %v981
  %v994 = vmul.f32 %v982, %v982
  %v995 = vmul.f32 %v983, %v983
  %v996 = vmul.f32 %v984, %v984
  %v997 = vadd.f32 %v993, %v994
  %v998 = vadd.f32 %v997, %v995
  %v999 = vadd.f32 %v998, %v996
  %1000 = vadd.xlane.f32.xlu0 %v999
  %v1001 = vpop.xlane.xlu0 %1000
  %v1002 = vmul.f32 %v1001, 0.001953125
  %v1003 = vmul.f32 %v992, %v992
  %v1004 = vsub.f32 %v1002, %v1003
  %v1005 = vmax.f32 %v1004, 0.0
  %v1006 = vadd.f32 %v1005, 1e-05
  %v1007 = vrsqrt.pop %v1006
  %v1008 = vmul.f32 %v985, %v1007
  %v1009 = vmul.f32 %v992, %v1008
  %v1010 = vsub.f32 %v986, %v1009
  %1012 = vset.pattern.permute.xlu0 0
  %1013 = vperm.xlu0 %1012, %v1008
  %v1014 = vpop.permute.xlu0 %1013
  %v1016 = vmul.f32 %v981, %v1014
  %v1017 = vmul.f32 %v982, %v1014
  %v1018 = vmul.f32 %v983, %v1014
  %v1019 = vmul.f32 %v984, %v1014
  %1021 = vset.pattern.permute.xlu0 0
  %1022 = vperm.xlu0 %1021, %v1010
  %v1023 = vpop.permute.xlu0 %1022
  %v1025 = vadd.f32 %v1016, %v1023
  %v1026 = vadd.f32 %v1017, %v1023
  %v1027 = vadd.f32 %v1018, %v1023
  %v1028 = vadd.f32 %v1019, %v1023
  %v1029 = vmax.f32 %v1025, 0.0
  %v1030 = vmax.f32 %v1026, 0.0
  %v1031 = vmax.f32 %v1027, 0.0
  %v1032 = vmax.f32 %v1028, 0.0
  %1033 = vst [vmem:[#allocation2 + $0x8] sm:$0xff] %v1029
  %1034 = vst [vmem:[#allocation2 + $0x10] sm:$0xff] %v1030
  %1035 = vst [vmem:[#allocation2 + $0x18] sm:$0xff] %v1031
  %1036 = vst [vmem:[#allocation2 + $0x20] sm:$0xff] %v1032
  %v1037 = vld [vmem:[#allocation2] sm:$0xff]
  %v1038 = vld [vmem:[#allocation2 + $0x8] sm:$0xff]
  %v1039 = vld [vmem:[#allocation2 + $0x10] sm:$0xff]
  %v1040 = vld [vmem:[#allocation2 + $0x18] sm:$0xff]
  %v1041 = vld [vmem:[#allocation2 + $0x20] sm:$0xff]
  %v1042 = vmul.f32 %v1037, %v111
  %v1043 = vmul.f32 %v1038, %v119
  %v1044 = vmul.f32 %v1039, %v120
  %v1045 = vmul.f32 %v1040, %v121
  %v1046 = vmul.f32 %v1041, %v117
  %v1047 = vmul.f32 %v1037, %v137
  %v1048 = vmul.f32 %v1038, %v145
  %v1049 = vmul.f32 %v1039, %v146
  %v1050 = vmul.f32 %v1040, %v147
  %v1051 = vmul.f32 %v1041, %v143
  %1057 = vrot.lane.b32.xlu0 %v1037, 127
  %v1058 = vpop.permute.xlu0 %1057
  %1059 = vrot.lane.b32.xlu0 %v1038, 127
  %v1060 = vpop.permute.xlu0 %1059
  %1061 = vrot.lane.b32.xlu0 %v1039, 127
  %v1062 = vpop.permute.xlu0 %1061
  %1063 = vrot.lane.b32.xlu0 %v1040, 127
  %v1064 = vpop.permute.xlu0 %1063
  %1065 = vrot.lane.b32.xlu0 %v1041, 127
  %v1066 = vpop.permute.xlu0 %1065
  %v1067 = vsel %vm173, %v1058, %v1060
  %v1068 = vsel %vm173, %v1060, %v1062
  %v1069 = vsel %vm173, %v1062, %v1064
  %v1070 = vsel %vm173, %v1064, %v1066
  %1076 = vrot.lane.b32.xlu0 %v1047, 126
  %v1077 = vpop.permute.xlu0 %1076
  %1078 = vrot.lane.b32.xlu0 %v1048, 126
  %v1079 = vpop.permute.xlu0 %1078
  %1080 = vrot.lane.b32.xlu0 %v1049, 126
  %v1081 = vpop.permute.xlu0 %1080
  %1082 = vrot.lane.b32.xlu0 %v1050, 126
  %v1083 = vpop.permute.xlu0 %1082
  %1084 = vrot.lane.b32.xlu0 %v1051, 126
  %v1085 = vpop.permute.xlu0 %1084
  %v1086 = vsel %vm193, %v1077, %v1079
  %v1087 = vsel %vm193, %v1079, %v1081
  %v1088 = vsel %vm193, %v1081, %v1083
  %v1089 = vsel %vm193, %v1083, %v1085
  %v1090 = vld [vmem:[%s4] sm:$0xff]
  %1096 = vrot.lane.b32.xlu0 %v1042, 17
  %v1097 = vpop.permute.xlu0 %1096
  %1098 = vrot.lane.b32.xlu0 %v1043, 17
  %v1099 = vpop.permute.xlu0 %1098
  %1100 = vrot.lane.b32.xlu0 %v1044, 17
  %v1101 = vpop.permute.xlu0 %1100
  %1102 = vrot.lane.b32.xlu0 %v1045, 17
  %v1103 = vpop.permute.xlu0 %1102
  %1104 = vrot.lane.b32.xlu0 %v1046, 17
  %v1105 = vpop.permute.xlu0 %1104
  %1106 = vrot.lane.b32.xlu0 %v1067, 17
  %v1107 = vpop.permute.xlu0 %1106
  %1108 = vrot.lane.b32.xlu0 %v1068, 17
  %v1109 = vpop.permute.xlu0 %1108
  %1110 = vrot.lane.b32.xlu0 %v1069, 17
  %v1111 = vpop.permute.xlu0 %1110
  %1112 = vrot.lane.b32.xlu0 %v1070, 17
  %v1113 = vpop.permute.xlu0 %1112
  %1114 = vrot.lane.b32.xlu0 %v1066, 17
  %v1115 = vpop.permute.xlu0 %1114
  %1116 = vrot.lane.b32.xlu0 %v1086, 17
  %v1117 = vpop.permute.xlu0 %1116
  %1118 = vrot.lane.b32.xlu0 %v1087, 17
  %v1119 = vpop.permute.xlu0 %1118
  %1120 = vrot.lane.b32.xlu0 %v1088, 17
  %v1121 = vpop.permute.xlu0 %1120
  %1122 = vrot.lane.b32.xlu0 %v1089, 17
  %v1123 = vpop.permute.xlu0 %1122
  %1124 = vrot.lane.b32.xlu0 %v1085, 17
  %v1125 = vpop.permute.xlu0 %1124
  %v1126 = vsel %vm234, %v1097, %v1099
  %v1127 = vsel %vm234, %v1099, %v1101
  %v1128 = vsel %vm234, %v1101, %v1103
  %v1129 = vsel %vm234, %v1103, %v1105
  %v1130 = vsel %vm234, %v1107, %v1109
  %v1131 = vsel %vm234, %v1109, %v1111
  %v1132 = vsel %vm234, %v1111, %v1113
  %v1133 = vsel %vm234, %v1113, %v1115
  %v1134 = vsel %vm234, %v1117, %v1119
  %v1135 = vsel %vm234, %v1119, %v1121
  %v1136 = vsel %vm234, %v1121, %v1123
  %v1137 = vsel %vm234, %v1123, %v1125
  %v1151 = vsel %vm259, %v1090, 0
  %1153 = vmatprep.subr.mxu0 0.0
  %1154 = vmatpush1.msra.mxu0 0.0
  %1155 = vmatprep.subr.mxu0 0.0
  %1156 = vmatpush1.msra.mxu0 0.0
  %1157 = vmatprep.subr.mxu0 0.0
  %1158 = vmatpush1.msra.mxu0 0.0
  %1159 = vmatprep.subr.mxu0 0.0
  %1160 = vmatpush1.msra.mxu0 0.0
  %1161 = vmatprep.subr.mxu0 0.0
  %1162 = vmatpush1.msra.mxu0 0.0
  %1163 = vmatprep.subr.mxu0 0.0
  %1164 = vmatpush1.msra.mxu0 0.0
  %1165 = vmatprep.subr.mxu0 0.0
  %1166 = vmatpush1.msra.mxu0 0.0
  %1167 = vmatprep.subr.mxu0 0.0
  %1168 = vmatpush1.msra.mxu0 0.0
  %1169 = vmatprep.subr.mxu0 0.0
  %1170 = vmatpush1.msra.mxu0 0.0
  %1171 = vmatprep.subr.mxu0 0.0
  %1172 = vmatpush1.msra.mxu0 0.0
  %1173 = vmatprep.subr.mxu0 0.0
  %1174 = vmatpush1.msra.mxu0 0.0
  %1175 = vmatprep.subr.mxu0 0.0
  %1176 = vmatpush1.msra.mxu0 0.0
  %1177 = vmatprep.subr.mxu0 0.0
  %1178 = vmatpush1.msra.mxu0 0.0
  %1179 = vmatprep.subr.mxu0 %v1135
  %1180 = vmatpush1.msra.mxu0 %v1134
  %1181 = vmatprep.subr.mxu0 %v1131
  %1182 = vmatpush1.msra.mxu0 %v1130
  %1183 = vmatprep.subr.mxu0 %v1127
  %1184 = vmatpush1.msra.mxu0 %v1126
  %1185 = vmatprep.subr.mxu0 0.0
  %1186 = vmatpush2.msra.mxu0 0.0
  %1187 = vmatprep.subr.mxu0 0.0
  %1188 = vmatpush2.msra.mxu0 0.0
  %1189 = vmatprep.subr.mxu0 0.0
  %1190 = vmatpush2.msra.mxu0 0.0
  %1191 = vmatprep.subr.mxu0 0.0
  %1192 = vmatpush2.msra.mxu0 0.0
  %1193 = vmatprep.subr.mxu0 0.0
  %1194 = vmatpush2.msra.mxu0 0.0
  %1195 = vmatprep.subr.mxu0 0.0
  %1196 = vmatpush2.msra.mxu0 0.0
  %1197 = vmatprep.subr.mxu0 0.0
  %1198 = vmatpush2.msra.mxu0 0.0
  %1199 = vmatprep.subr.mxu0 0.0
  %1200 = vmatpush2.msra.mxu0 0.0
  %1201 = vmatprep.subr.mxu0 0.0
  %1202 = vmatpush2.msra.mxu0 0.0
  %1203 = vmatprep.subr.mxu0 0.0
  %1204 = vmatpush2.msra.mxu0 0.0
  %1205 = vmatprep.subr.mxu0 0.0
  %1206 = vmatpush2.msra.mxu0 0.0
  %1207 = vmatprep.subr.mxu0 0.0
  %1208 = vmatpush2.msra.mxu0 0.0
  %1209 = vmatprep.subr.mxu0 0.0
  %1210 = vmatpush2.msra.mxu0 0.0
  %1211 = vmatprep.subr.mxu0 0.0
  %1212 = vmatpush2.msra.mxu0 0.0
  %1213 = vmatprep.subr.mxu0 0.0
  %1214 = vmatpush2.msra.mxu0 0.0
  %1215 = vmatprep.subr.mxu0 0.0
  %1216 = vmatpush2.msra.mxu0 0.0
  %1217 = vmatprep.mubr.f32.mxu0 0.0
  %1218 = vmatmul.mubr.f32.gmra.mxu0 %v1151
  %v1219 = vpop.f32.mrf.mxu0
  %v1220 = vadd.f32 0.0, %v1219
  %v1221 = vpop.f32.mrf.mxu0
  %v1222 = vadd.f32 0.0, %v1221
  %1223 = vdwg.mxu0
  %1224 = vmatprep.subr.mxu0 0.0
  %1225 = vmatpush1.msra.mxu0 0.0
  %1226 = vmatprep.subr.mxu0 0.0
  %1227 = vmatpush1.msra.mxu0 0.0
  %1228 = vmatprep.subr.mxu0 0.0
  %1229 = vmatpush1.msra.mxu0 0.0
  %1230 = vmatprep.subr.mxu0 0.0
  %1231 = vmatpush1.msra.mxu0 0.0
  %1232 = vmatprep.subr.mxu0 0.0
  %1233 = vmatpush1.msra.mxu0 0.0
  %1234 = vmatprep.subr.mxu0 0.0
  %1235 = vmatpush1.msra.mxu0 0.0
  %1236 = vmatprep.subr.mxu0 0.0
  %1237 = vmatpush1.msra.mxu0 0.0
  %1238 = vmatprep.subr.mxu0 0.0
  %1239 = vmatpush1.msra.mxu0 0.0
  %1240 = vmatprep.subr.mxu0 0.0
  %1241 = vmatpush1.msra.mxu0 0.0
  %1242 = vmatprep.subr.mxu0 0.0
  %1243 = vmatpush1.msra.mxu0 0.0
  %1244 = vmatprep.subr.mxu0 0.0
  %1245 = vmatpush1.msra.mxu0 0.0
  %1246 = vmatprep.subr.mxu0 0.0
  %1247 = vmatpush1.msra.mxu0 0.0
  %1248 = vmatprep.subr.mxu0 0.0
  %1249 = vmatpush1.msra.mxu0 0.0
  %1250 = vmatprep.subr.mxu0 %v1137
  %1251 = vmatpush1.msra.mxu0 %v1136
  %1252 = vmatprep.subr.mxu0 %v1133
  %1253 = vmatpush1.msra.mxu0 %v1132
  %1254 = vmatprep.subr.mxu0 %v1129
  %1255 = vmatpush1.msra.mxu0 %v1128
  %1256 = vmatprep.subr.mxu0 0.0
  %1257 = vmatpush2.msra.mxu0 0.0
  %1258 = vmatprep.subr.mxu0 0.0
  %1259 = vmatpush2.msra.mxu0 0.0
  %1260 = vmatprep.subr.mxu0 0.0
  %1261 = vmatpush2.msra.mxu0 0.0
  %1262 = vmatprep.subr.mxu0 0.0
  %1263 = vmatpush2.msra.mxu0 0.0
  %1264 = vmatprep.subr.mxu0 0.0
  %1265 = vmatpush2.msra.mxu0 0.0
  %1266 = vmatprep.subr.mxu0 0.0
  %1267 = vmatpush2.msra.mxu0 0.0
  %1268 = vmatprep.subr.mxu0 0.0
  %1269 = vmatpush2.msra.mxu0 0.0
  %1270 = vmatprep.subr.mxu0 0.0
  %1271 = vmatpush2.msra.mxu0 0.0
  %1272 = vmatprep.subr.mxu0 0.0
  %1273 = vmatpush2.msra.mxu0 0.0
  %1274 = vmatprep.subr.mxu0 0.0
  %1275 = vmatpush2.msra.mxu0 0.0
  %1276 = vmatprep.subr.mxu0 0.0
  %1277 = vmatpush2.msra.mxu0 0.0
  %1278 = vmatprep.subr.mxu0 0.0
  %1279 = vmatpush2.msra.mxu0 0.0
  %1280 = vmatprep.subr.mxu0 0.0
  %1281 = vmatpush2.msra.mxu0 0.0
  %1282 = vmatprep.subr.mxu0 0.0
  %1283 = vmatpush2.msra.mxu0 0.0
  %1284 = vmatprep.subr.mxu0 0.0
  %1285 = vmatpush2.msra.mxu0 0.0
  %1286 = vmatprep.subr.mxu0 0.0
  %1287 = vmatpush2.msra.mxu0 0.0
  %1288 = vmatprep.mubr.f32.mxu0 0.0
  %1289 = vmatmul.mubr.f32.gmra.mxu0 %v1151
  %v1290 = vpop.f32.mrf.mxu0
  %v1291 = vadd.f32 0.0, %v1290
  %v1292 = vpop.f32.mrf.mxu0
  %v1293 = vadd.f32 0.0, %v1292
  %1294 = vdwg.mxu0
  %v1295 = vmul.f32 %v1220, %v75
  %v1296 = vmul.f32 %v1222, %v76
  %v1297 = vmul.f32 %v1291, %v77
  %v1298 = vmul.f32 %v1293, %v78
  %v1299 = vadd.f32 %v1295, 0.0
  %v1300 = vadd.f32 %v1296, 0.0
  %v1301 = vadd.f32 %v1297, 0.0
  %v1302 = vadd.f32 %v1298, 0.0
  %v1303 = vmul.f32 %v1037, %v414
  %v1304 = vmul.f32 %v1038, %v421
  %v1305 = vmul.f32 %v1039, %v422
  %v1306 = vmul.f32 %v1040, %v423
  %v1307 = vmul.f32 %v1041, %v420
  %v1308 = vld [vmem:[#allocation2 + $0x8] sm:$0xff]
  %v1309 = vld [vmem:[#allocation2 + $0x10] sm:$0xff]
  %v1310 = vld [vmem:[#allocation2 + $0x18] sm:$0xff]
  %v1311 = vld [vmem:[#allocation2 + $0x20] sm:$0xff]
  %v1312 = vld [vmem:[#allocation2 + $0x28] sm:$0xff]
  %v1313 = vmul.f32 %v1308, %v440
  %v1314 = vmul.f32 %v1309, %v448
  %v1315 = vmul.f32 %v1310, %v449
  %v1316 = vmul.f32 %v1311, %v450
  %v1317 = vmul.f32 %v1312, %v446
  %1323 = vrot.lane.b32.xlu0 %v1313, 126
  %v1324 = vpop.permute.xlu0 %1323
  %1325 = vrot.lane.b32.xlu0 %v1314, 126
  %v1326 = vpop.permute.xlu0 %1325
  %1327 = vrot.lane.b32.xlu0 %v1315, 126
  %v1328 = vpop.permute.xlu0 %1327
  %1329 = vrot.lane.b32.xlu0 %v1316, 126
  %v1330 = vpop.permute.xlu0 %1329
  %1331 = vrot.lane.b32.xlu0 %v1317, 126
  %v1332 = vpop.permute.xlu0 %1331
  %v1333 = vsel %vm193, %v1324, %v1326
  %v1334 = vsel %vm193, %v1326, %v1328
  %v1335 = vsel %vm193, %v1328, %v1330
  %v1336 = vsel %vm193, %v1330, %v1332
  %s1337 = scalar_lea.vmem %s4, 8
  %v1338 = vld [vmem:[%s1337] sm:$0xff]
  %1344 = vrot.lane.b32.xlu0 %v1303, 1
  %v1345 = vpop.permute.xlu0 %1344
  %1346 = vrot.lane.b32.xlu0 %v1304, 1
  %v1347 = vpop.permute.xlu0 %1346
  %1348 = vrot.lane.b32.xlu0 %v1305, 1
  %v1349 = vpop.permute.xlu0 %1348
  %1350 = vrot.lane.b32.xlu0 %v1306, 1
  %v1351 = vpop.permute.xlu0 %1350
  %1352 = vrot.lane.b32.xlu0 %v1307, 1
  %v1353 = vpop.permute.xlu0 %1352
  %1354 = vrot.lane.b32.xlu0 %v1060, 1
  %v1355 = vpop.permute.xlu0 %1354
  %1356 = vrot.lane.b32.xlu0 %v1068, 1
  %v1357 = vpop.permute.xlu0 %1356
  %1358 = vrot.lane.b32.xlu0 %v1069, 1
  %v1359 = vpop.permute.xlu0 %1358
  %1360 = vrot.lane.b32.xlu0 %v1070, 1
  %v1361 = vpop.permute.xlu0 %1360
  %1362 = vrot.lane.b32.xlu0 %v1066, 1
  %v1363 = vpop.permute.xlu0 %1362
  %1364 = vrot.lane.b32.xlu0 %v1324, 1
  %v1365 = vpop.permute.xlu0 %1364
  %1366 = vrot.lane.b32.xlu0 %v1333, 1
  %v1367 = vpop.permute.xlu0 %1366
  %1368 = vrot.lane.b32.xlu0 %v1334, 1
  %v1369 = vpop.permute.xlu0 %1368
  %1370 = vrot.lane.b32.xlu0 %v1335, 1
  %v1371 = vpop.permute.xlu0 %1370
  %1372 = vrot.lane.b32.xlu0 %v1336, 1
  %v1373 = vpop.permute.xlu0 %1372
  %v1374 = vsel %vm447, %v1345, %v1347
  %v1375 = vsel %vm447, %v1347, %v1349
  %v1376 = vsel %vm447, %v1349, %v1351
  %v1377 = vsel %vm447, %v1351, %v1353
  %v1378 = vsel %vm447, %v1355, %v1357
  %v1379 = vsel %vm447, %v1357, %v1359
  %v1380 = vsel %vm447, %v1359, %v1361
  %v1381 = vsel %vm447, %v1361, %v1363
  %v1382 = vsel %vm447, %v1365, %v1367
  %v1383 = vsel %vm447, %v1367, %v1369
  %v1384 = vsel %vm447, %v1369, %v1371
  %v1385 = vsel %vm447, %v1371, %v1373
  %v1399 = vsel %vm259, %v1338, 0
  %1401 = vmatprep.subr.mxu0 0.0
  %1402 = vmatpush1.msra.mxu0 0.0
  %1403 = vmatprep.subr.mxu0 0.0
  %1404 = vmatpush1.msra.mxu0 0.0
  %1405 = vmatprep.subr.mxu0 0.0
  %1406 = vmatpush1.msra.mxu0 0.0
  %1407 = vmatprep.subr.mxu0 0.0
  %1408 = vmatpush1.msra.mxu0 0.0
  %1409 = vmatprep.subr.mxu0 0.0
  %1410 = vmatpush1.msra.mxu0 0.0
  %1411 = vmatprep.subr.mxu0 0.0
  %1412 = vmatpush1.msra.mxu0 0.0
  %1413 = vmatprep.subr.mxu0 0.0
  %1414 = vmatpush1.msra.mxu0 0.0
  %1415 = vmatprep.subr.mxu0 0.0
  %1416 = vmatpush1.msra.mxu0 0.0
  %1417 = vmatprep.subr.mxu0 0.0
  %1418 = vmatpush1.msra.mxu0 0.0
  %1419 = vmatprep.subr.mxu0 0.0
  %1420 = vmatpush1.msra.mxu0 0.0
  %1421 = vmatprep.subr.mxu0 0.0
  %1422 = vmatpush1.msra.mxu0 0.0
  %1423 = vmatprep.subr.mxu0 0.0
  %1424 = vmatpush1.msra.mxu0 0.0
  %1425 = vmatprep.subr.mxu0 0.0
  %1426 = vmatpush1.msra.mxu0 0.0
  %1427 = vmatprep.subr.mxu0 %v1383
  %1428 = vmatpush1.msra.mxu0 %v1382
  %1429 = vmatprep.subr.mxu0 %v1379
  %1430 = vmatpush1.msra.mxu0 %v1378
  %1431 = vmatprep.subr.mxu0 %v1375
  %1432 = vmatpush1.msra.mxu0 %v1374
  %1433 = vmatprep.subr.mxu0 0.0
  %1434 = vmatpush2.msra.mxu0 0.0
  %1435 = vmatprep.subr.mxu0 0.0
  %1436 = vmatpush2.msra.mxu0 0.0
  %1437 = vmatprep.subr.mxu0 0.0
  %1438 = vmatpush2.msra.mxu0 0.0
  %1439 = vmatprep.subr.mxu0 0.0
  %1440 = vmatpush2.msra.mxu0 0.0
  %1441 = vmatprep.subr.mxu0 0.0
  %1442 = vmatpush2.msra.mxu0 0.0
  %1443 = vmatprep.subr.mxu0 0.0
  %1444 = vmatpush2.msra.mxu0 0.0
  %1445 = vmatprep.subr.mxu0 0.0
  %1446 = vmatpush2.msra.mxu0 0.0
  %1447 = vmatprep.subr.mxu0 0.0
  %1448 = vmatpush2.msra.mxu0 0.0
  %1449 = vmatprep.subr.mxu0 0.0
  %1450 = vmatpush2.msra.mxu0 0.0
  %1451 = vmatprep.subr.mxu0 0.0
  %1452 = vmatpush2.msra.mxu0 0.0
  %1453 = vmatprep.subr.mxu0 0.0
  %1454 = vmatpush2.msra.mxu0 0.0
  %1455 = vmatprep.subr.mxu0 0.0
  %1456 = vmatpush2.msra.mxu0 0.0
  %1457 = vmatprep.subr.mxu0 0.0
  %1458 = vmatpush2.msra.mxu0 0.0
  %1459 = vmatprep.subr.mxu0 0.0
  %1460 = vmatpush2.msra.mxu0 0.0
  %1461 = vmatprep.subr.mxu0 0.0
  %1462 = vmatpush2.msra.mxu0 0.0
  %1463 = vmatprep.subr.mxu0 0.0
  %1464 = vmatpush2.msra.mxu0 0.0
  %1465 = vmatprep.mubr.f32.mxu0 0.0
  %1466 = vmatmul.mubr.f32.gmra.mxu0 %v1399
  %v1467 = vpop.f32.mrf.mxu0
  %v1468 = vadd.f32 0.0, %v1467
  %v1469 = vpop.f32.mrf.mxu0
  %v1470 = vadd.f32 0.0, %v1469
  %1471 = vdwg.mxu0
  %1472 = vmatprep.subr.mxu0 0.0
  %1473 = vmatpush1.msra.mxu0 0.0
  %1474 = vmatprep.subr.mxu0 0.0
  %1475 = vmatpush1.msra.mxu0 0.0
  %1476 = vmatprep.subr.mxu0 0.0
  %1477 = vmatpush1.msra.mxu0 0.0
  %1478 = vmatprep.subr.mxu0 0.0
  %1479 = vmatpush1.msra.mxu0 0.0
  %1480 = vmatprep.subr.mxu0 0.0
  %1481 = vmatpush1.msra.mxu0 0.0
  %1482 = vmatprep.subr.mxu0 0.0
  %1483 = vmatpush1.msra.mxu0 0.0
  %1484 = vmatprep.subr.mxu0 0.0
  %1485 = vmatpush1.msra.mxu0 0.0
  %1486 = vmatprep.subr.mxu0 0.0
  %1487 = vmatpush1.msra.mxu0 0.0
  %1488 = vmatprep.subr.mxu0 0.0
  %1489 = vmatpush1.msra.mxu0 0.0
  %1490 = vmatprep.subr.mxu0 0.0
  %1491 = vmatpush1.msra.mxu0 0.0
  %1492 = vmatprep.subr.mxu0 0.0
  %1493 = vmatpush1.msra.mxu0 0.0
  %1494 = vmatprep.subr.mxu0 0.0
  %1495 = vmatpush1.msra.mxu0 0.0
  %1496 = vmatprep.subr.mxu0 0.0
  %1497 = vmatpush1.msra.mxu0 0.0
  %1498 = vmatprep.subr.mxu0 %v1385
  %1499 = vmatpush1.msra.mxu0 %v1384
  %1500 = vmatprep.subr.mxu0 %v1381
  %1501 = vmatpush1.msra.mxu0 %v1380
  %1502 = vmatprep.subr.mxu0 %v1377
  %1503 = vmatpush1.msra.mxu0 %v1376
  %1504 = vmatprep.subr.mxu0 0.0
  %1505 = vmatpush2.msra.mxu0 0.0
  %1506 = vmatprep.subr.mxu0 0.0
  %1507 = vmatpush2.msra.mxu0 0.0
  %1508 = vmatprep.subr.mxu0 0.0
  %1509 = vmatpush2.msra.mxu0 0.0
  %1510 = vmatprep.subr.mxu0 0.0
  %1511 = vmatpush2.msra.mxu0 0.0
  %1512 = vmatprep.subr.mxu0 0.0
  %1513 = vmatpush2.msra.mxu0 0.0
  %1514 = vmatprep.subr.mxu0 0.0
  %1515 = vmatpush2.msra.mxu0 0.0
  %1516 = vmatprep.subr.mxu0 0.0
  %1517 = vmatpush2.msra.mxu0 0.0
  %1518 = vmatprep.subr.mxu0 0.0
  %1519 = vmatpush2.msra.mxu0 0.0
  %1520 = vmatprep.subr.mxu0 0.0
  %1521 = vmatpush2.msra.mxu0 0.0
  %1522 = vmatprep.subr.mxu0 0.0
  %1523 = vmatpush2.msra.mxu0 0.0
  %1524 = vmatprep.subr.mxu0 0.0
  %1525 = vmatpush2.msra.mxu0 0.0
  %1526 = vmatprep.subr.mxu0 0.0
  %1527 = vmatpush2.msra.mxu0 0.0
  %1528 = vmatprep.subr.mxu0 0.0
  %1529 = vmatpush2.msra.mxu0 0.0
  %1530 = vmatprep.subr.mxu0 0.0
  %1531 = vmatpush2.msra.mxu0 0.0
  %1532 = vmatprep.subr.mxu0 0.0
  %1533 = vmatpush2.msra.mxu0 0.0
  %1534 = vmatprep.subr.mxu0 0.0
  %1535 = vmatpush2.msra.mxu0 0.0
  %1536 = vmatprep.mubr.f32.mxu0 0.0
  %1537 = vmatmul.mubr.f32.gmra.mxu0 %v1399
  %v1538 = vpop.f32.mrf.mxu0
  %v1539 = vadd.f32 0.0, %v1538
  %v1540 = vpop.f32.mrf.mxu0
  %v1541 = vadd.f32 0.0, %v1540
  %1542 = vdwg.mxu0
  %v1543 = vadd.f32 %v1299, %v1468
  %v1544 = vadd.f32 %v1300, %v1470
  %v1545 = vadd.f32 %v1301, %v1539
  %v1546 = vadd.f32 %v1302, %v1541
  %v1547 = vmul.f32 %v1308, %v691
  %v1548 = vmul.f32 %v1309, %v699
  %v1549 = vmul.f32 %v1310, %v700
  %v1550 = vmul.f32 %v1311, %v701
  %v1551 = vmul.f32 %v1312, %v697
  %v1552 = vmul.f32 %v1308, %v713
  %v1553 = vmul.f32 %v1309, %v720
  %v1554 = vmul.f32 %v1310, %v721
  %v1555 = vmul.f32 %v1311, %v722
  %v1556 = vmul.f32 %v1312, %v719
  %1562 = vrot.lane.b32.xlu0 %v1308, 127
  %v1563 = vpop.permute.xlu0 %1562
  %1564 = vrot.lane.b32.xlu0 %v1309, 127
  %v1565 = vpop.permute.xlu0 %1564
  %1566 = vrot.lane.b32.xlu0 %v1310, 127
  %v1567 = vpop.permute.xlu0 %1566
  %1568 = vrot.lane.b32.xlu0 %v1311, 127
  %v1569 = vpop.permute.xlu0 %1568
  %1570 = vrot.lane.b32.xlu0 %v1312, 127
  %v1571 = vpop.permute.xlu0 %1570
  %v1572 = vsel %vm173, %v1563, %v1565
  %v1573 = vsel %vm173, %v1565, %v1567
  %v1574 = vsel %vm173, %v1567, %v1569
  %v1575 = vsel %vm173, %v1569, %v1571
  %1581 = vrot.lane.b32.xlu0 %v1552, 126
  %v1582 = vpop.permute.xlu0 %1581
  %1583 = vrot.lane.b32.xlu0 %v1553, 126
  %v1584 = vpop.permute.xlu0 %1583
  %1585 = vrot.lane.b32.xlu0 %v1554, 126
  %v1586 = vpop.permute.xlu0 %1585
  %1587 = vrot.lane.b32.xlu0 %v1555, 126
  %v1588 = vpop.permute.xlu0 %1587
  %1589 = vrot.lane.b32.xlu0 %v1556, 126
  %v1590 = vpop.permute.xlu0 %1589
  %v1591 = vsel %vm193, %v1582, %v1584
  %v1592 = vsel %vm193, %v1584, %v1586
  %v1593 = vsel %vm193, %v1586, %v1588
  %v1594 = vsel %vm193, %v1588, %v1590
  %s1595 = scalar_lea.vmem %s4, 16
  %v1596 = vld [vmem:[%s1595] sm:$0xff]
  %1602 = vrot.lane.b32.xlu0 %v1547, 113
  %v1603 = vpop.permute.xlu0 %1602
  %1604 = vrot.lane.b32.xlu0 %v1548, 113
  %v1605 = vpop.permute.xlu0 %1604
  %1606 = vrot.lane.b32.xlu0 %v1549, 113
  %v1607 = vpop.permute.xlu0 %1606
  %1608 = vrot.lane.b32.xlu0 %v1550, 113
  %v1609 = vpop.permute.xlu0 %1608
  %1610 = vrot.lane.b32.xlu0 %v1551, 113
  %v1611 = vpop.permute.xlu0 %1610
  %1612 = vrot.lane.b32.xlu0 %v1572, 113
  %v1613 = vpop.permute.xlu0 %1612
  %1614 = vrot.lane.b32.xlu0 %v1573, 113
  %v1615 = vpop.permute.xlu0 %1614
  %1616 = vrot.lane.b32.xlu0 %v1574, 113
  %v1617 = vpop.permute.xlu0 %1616
  %1618 = vrot.lane.b32.xlu0 %v1575, 113
  %v1619 = vpop.permute.xlu0 %1618
  %1620 = vrot.lane.b32.xlu0 %v1571, 113
  %v1621 = vpop.permute.xlu0 %1620
  %1622 = vrot.lane.b32.xlu0 %v1591, 113
  %v1623 = vpop.permute.xlu0 %1622
  %1624 = vrot.lane.b32.xlu0 %v1592, 113
  %v1625 = vpop.permute.xlu0 %1624
  %1626 = vrot.lane.b32.xlu0 %v1593, 113
  %v1627 = vpop.permute.xlu0 %1626
  %1628 = vrot.lane.b32.xlu0 %v1594, 113
  %v1629 = vpop.permute.xlu0 %1628
  %1630 = vrot.lane.b32.xlu0 %v1590, 113
  %v1631 = vpop.permute.xlu0 %1630
  %v1632 = vsel %vm144, %v1603, %v1605
  %v1633 = vsel %vm144, %v1605, %v1607
  %v1634 = vsel %vm144, %v1607, %v1609
  %v1635 = vsel %vm144, %v1609, %v1611
  %v1636 = vsel %vm144, %v1613, %v1615
  %v1637 = vsel %vm144, %v1615, %v1617
  %v1638 = vsel %vm144, %v1617, %v1619
  %v1639 = vsel %vm144, %v1619, %v1621
  %v1640 = vsel %vm144, %v1623, %v1625
  %v1641 = vsel %vm144, %v1625, %v1627
  %v1642 = vsel %vm144, %v1627, %v1629
  %v1643 = vsel %vm144, %v1629, %v1631
  %v1657 = vsel %vm259, %v1596, 0
  %1659 = vmatprep.subr.mxu0 0.0
  %1660 = vmatpush1.msra.mxu0 0.0
  %1661 = vmatprep.subr.mxu0 0.0
  %1662 = vmatpush1.msra.mxu0 0.0
  %1663 = vmatprep.subr.mxu0 0.0
  %1664 = vmatpush1.msra.mxu0 0.0
  %1665 = vmatprep.subr.mxu0 0.0
  %1666 = vmatpush1.msra.mxu0 0.0
  %1667 = vmatprep.subr.mxu0 0.0
  %1668 = vmatpush1.msra.mxu0 0.0
  %1669 = vmatprep.subr.mxu0 0.0
  %1670 = vmatpush1.msra.mxu0 0.0
  %1671 = vmatprep.subr.mxu0 0.0
  %1672 = vmatpush1.msra.mxu0 0.0
  %1673 = vmatprep.subr.mxu0 0.0
  %1674 = vmatpush1.msra.mxu0 0.0
  %1675 = vmatprep.subr.mxu0 0.0
  %1676 = vmatpush1.msra.mxu0 0.0
  %1677 = vmatprep.subr.mxu0 0.0
  %1678 = vmatpush1.msra.mxu0 0.0
  %1679 = vmatprep.subr.mxu0 0.0
  %1680 = vmatpush1.msra.mxu0 0.0
  %1681 = vmatprep.subr.mxu0 0.0
  %1682 = vmatpush1.msra.mxu0 0.0
  %1683 = vmatprep.subr.mxu0 0.0
  %1684 = vmatpush1.msra.mxu0 0.0
  %1685 = vmatprep.subr.mxu0 %v1641
  %1686 = vmatpush1.msra.mxu0 %v1640
  %1687 = vmatprep.subr.mxu0 %v1637
  %1688 = vmatpush1.msra.mxu0 %v1636
  %1689 = vmatprep.subr.mxu0 %v1633
  %1690 = vmatpush1.msra.mxu0 %v1632
  %1691 = vmatprep.subr.mxu0 0.0
  %1692 = vmatpush2.msra.mxu0 0.0
  %1693 = vmatprep.subr.mxu0 0.0
  %1694 = vmatpush2.msra.mxu0 0.0
  %1695 = vmatprep.subr.mxu0 0.0
  %1696 = vmatpush2.msra.mxu0 0.0
  %1697 = vmatprep.subr.mxu0 0.0
  %1698 = vmatpush2.msra.mxu0 0.0
  %1699 = vmatprep.subr.mxu0 0.0
  %1700 = vmatpush2.msra.mxu0 0.0
  %1701 = vmatprep.subr.mxu0 0.0
  %1702 = vmatpush2.msra.mxu0 0.0
  %1703 = vmatprep.subr.mxu0 0.0
  %1704 = vmatpush2.msra.mxu0 0.0
  %1705 = vmatprep.subr.mxu0 0.0
  %1706 = vmatpush2.msra.mxu0 0.0
  %1707 = vmatprep.subr.mxu0 0.0
  %1708 = vmatpush2.msra.mxu0 0.0
  %1709 = vmatprep.subr.mxu0 0.0
  %1710 = vmatpush2.msra.mxu0 0.0
  %1711 = vmatprep.subr.mxu0 0.0
  %1712 = vmatpush2.msra.mxu0 0.0
  %1713 = vmatprep.subr.mxu0 0.0
  %1714 = vmatpush2.msra.mxu0 0.0
  %1715 = vmatprep.subr.mxu0 0.0
  %1716 = vmatpush2.msra.mxu0 0.0
  %1717 = vmatprep.subr.mxu0 0.0
  %1718 = vmatpush2.msra.mxu0 0.0
  %1719 = vmatprep.subr.mxu0 0.0
  %1720 = vmatpush2.msra.mxu0 0.0
  %1721 = vmatprep.subr.mxu0 0.0
  %1722 = vmatpush2.msra.mxu0 0.0
  %1723 = vmatprep.mubr.f32.mxu0 0.0
  %1724 = vmatmul.mubr.f32.gmra.mxu0 %v1657
  %v1725 = vpop.f32.mrf.mxu0
  %v1726 = vadd.f32 0.0, %v1725
  %v1727 = vpop.f32.mrf.mxu0
  %v1728 = vadd.f32 0.0, %v1727
  %1729 = vdwg.mxu0
  %1730 = vmatprep.subr.mxu0 0.0
  %1731 = vmatpush1.msra.mxu0 0.0
  %1732 = vmatprep.subr.mxu0 0.0
  %1733 = vmatpush1.msra.mxu0 0.0
  %1734 = vmatprep.subr.mxu0 0.0
  %1735 = vmatpush1.msra.mxu0 0.0
  %1736 = vmatprep.subr.mxu0 0.0
  %1737 = vmatpush1.msra.mxu0 0.0
  %1738 = vmatprep.subr.mxu0 0.0
  %1739 = vmatpush1.msra.mxu0 0.0
  %1740 = vmatprep.subr.mxu0 0.0
  %1741 = vmatpush1.msra.mxu0 0.0
  %1742 = vmatprep.subr.mxu0 0.0
  %1743 = vmatpush1.msra.mxu0 0.0
  %1744 = vmatprep.subr.mxu0 0.0
  %1745 = vmatpush1.msra.mxu0 0.0
  %1746 = vmatprep.subr.mxu0 0.0
  %1747 = vmatpush1.msra.mxu0 0.0
  %1748 = vmatprep.subr.mxu0 0.0
  %1749 = vmatpush1.msra.mxu0 0.0
  %1750 = vmatprep.subr.mxu0 0.0
  %1751 = vmatpush1.msra.mxu0 0.0
  %1752 = vmatprep.subr.mxu0 0.0
  %1753 = vmatpush1.msra.mxu0 0.0
  %1754 = vmatprep.subr.mxu0 0.0
  %1755 = vmatpush1.msra.mxu0 0.0
  %1756 = vmatprep.subr.mxu0 %v1643
  %1757 = vmatpush1.msra.mxu0 %v1642
  %1758 = vmatprep.subr.mxu0 %v1639
  %1759 = vmatpush1.msra.mxu0 %v1638
  %1760 = vmatprep.subr.mxu0 %v1635
  %1761 = vmatpush1.msra.mxu0 %v1634
  %1762 = vmatprep.subr.mxu0 0.0
  %1763 = vmatpush2.msra.mxu0 0.0
  %1764 = vmatprep.subr.mxu0 0.0
  %1765 = vmatpush2.msra.mxu0 0.0
  %1766 = vmatprep.subr.mxu0 0.0
  %1767 = vmatpush2.msra.mxu0 0.0
  %1768 = vmatprep.subr.mxu0 0.0
  %1769 = vmatpush2.msra.mxu0 0.0
  %1770 = vmatprep.subr.mxu0 0.0
  %1771 = vmatpush2.msra.mxu0 0.0
  %1772 = vmatprep.subr.mxu0 0.0
  %1773 = vmatpush2.msra.mxu0 0.0
  %1774 = vmatprep.subr.mxu0 0.0
  %1775 = vmatpush2.msra.mxu0 0.0
  %1776 = vmatprep.subr.mxu0 0.0
  %1777 = vmatpush2.msra.mxu0 0.0
  %1778 = vmatprep.subr.mxu0 0.0
  %1779 = vmatpush2.msra.mxu0 0.0
  %1780 = vmatprep.subr.mxu0 0.0
  %1781 = vmatpush2.msra.mxu0 0.0
  %1782 = vmatprep.subr.mxu0 0.0
  %1783 = vmatpush2.msra.mxu0 0.0
  %1784 = vmatprep.subr.mxu0 0.0
  %1785 = vmatpush2.msra.mxu0 0.0
  %1786 = vmatprep.subr.mxu0 0.0
  %1787 = vmatpush2.msra.mxu0 0.0
  %1788 = vmatprep.subr.mxu0 0.0
  %1789 = vmatpush2.msra.mxu0 0.0
  %1790 = vmatprep.subr.mxu0 0.0
  %1791 = vmatpush2.msra.mxu0 0.0
  %1792 = vmatprep.subr.mxu0 0.0
  %1793 = vmatpush2.msra.mxu0 0.0
  %1794 = vmatprep.mubr.f32.mxu0 0.0
  %1795 = vmatmul.mubr.f32.gmra.mxu0 %v1657
  %v1796 = vpop.f32.mrf.mxu0
  %v1797 = vadd.f32 0.0, %v1796
  %v1798 = vpop.f32.mrf.mxu0
  %v1799 = vadd.f32 0.0, %v1798
  %1800 = vdwg.mxu0
  %v1801 = vmul.f32 %v1726, %v87
  %v1802 = vmul.f32 %v1728, %v88
  %v1803 = vmul.f32 %v1797, %v89
  %v1804 = vmul.f32 %v1799, %v90
  %v1805 = vadd.f32 %v1543, %v1801
  %v1806 = vadd.f32 %v1544, %v1802
  %v1807 = vadd.f32 %v1545, %v1803
  %v1808 = vadd.f32 %v1546, %v1804
  %v1809 = vld [vmem:[%s5] sm:$0xff]
  %v1810 = vld [vmem:[%s6] sm:$0xff]
  %v1811 = vadd.f32 %v1805, %v1806
  %v1812 = vadd.f32 %v1811, %v1807
  %v1813 = vadd.f32 %v1812, %v1808
  %1814 = vadd.xlane.f32.xlu0 %v1813
  %v1815 = vpop.xlane.xlu0 %1814
  %v1816 = vmul.f32 %v1815, 0.001953125
  %v1817 = vmul.f32 %v1805, %v1805
  %v1818 = vmul.f32 %v1806, %v1806
  %v1819 = vmul.f32 %v1807, %v1807
  %v1820 = vmul.f32 %v1808, %v1808
  %v1821 = vadd.f32 %v1817, %v1818
  %v1822 = vadd.f32 %v1821, %v1819
  %v1823 = vadd.f32 %v1822, %v1820
  %1824 = vadd.xlane.f32.xlu0 %v1823
  %v1825 = vpop.xlane.xlu0 %1824
  %v1826 = vmul.f32 %v1825, 0.001953125
  %v1827 = vmul.f32 %v1816, %v1816
  %v1828 = vsub.f32 %v1826, %v1827
  %v1829 = vmax.f32 %v1828, 0.0
  %v1830 = vadd.f32 %v1829, 1e-05
  %v1831 = vrsqrt.pop %v1830
  %v1832 = vmul.f32 %v1809, %v1831
  %v1833 = vmul.f32 %v1816, %v1832
  %v1834 = vsub.f32 %v1810, %v1833
  %1836 = vset.pattern.permute.xlu0 0
  %1837 = vperm.xlu0 %1836, %v1832
  %v1838 = vpop.permute.xlu0 %1837
  %v1840 = vmul.f32 %v1805, %v1838
  %v1841 = vmul.f32 %v1806, %v1838
  %v1842 = vmul.f32 %v1807, %v1838
  %v1843 = vmul.f32 %v1808, %v1838
  %1845 = vset.pattern.permute.xlu0 0
  %1846 = vperm.xlu0 %1845, %v1834
  %v1847 = vpop.permute.xlu0 %1846
  %v1849 = vadd.f32 %v1840, %v1847
  %v1850 = vadd.f32 %v1841, %v1847
  %v1851 = vadd.f32 %v1842, %v1847
  %v1852 = vadd.f32 %v1843, %v1847
  %v1853 = vadd.f32 %v1849, %v93
  %v1854 = vadd.f32 %v1850, %v94
  %v1855 = vadd.f32 %v1851, %v95
  %v1856 = vadd.f32 %v1852, %v96
  %v1857 = vmax.f32 %v1853, 0.0
  %v1858 = vmax.f32 %v1854, 0.0
  %v1859 = vmax.f32 %v1855, 0.0
  %v1860 = vmax.f32 %v1856, 0.0
  %1861 = vst [vmem:[%s7] sm:$0xff] %v1857
  %1862 = vst [vmem:[%s7 + $0x8] sm:$0xff] %v1858
  %1863 = vst [vmem:[%s7 + $0x10] sm:$0xff] %v1859
  %1864 = vst [vmem:[%s7 + $0x18] sm:$0xff] %v1860
  // Predicated region
  $region30: #{basic_block_forward.1} parent=0 // pred_check
    _
  $region31: #{basic_block_forward.1} parent=0 // pred_check_branch
    %1866 = sbr.rel (0) target = $region33
  $region32: #{basic_block_forward.1} parent=0 // pred_region
    _
  $region33: #{basic_block_forward.1} parent=0 // pred_fallthru
    _
  // Predicated region
  $region34: #{basic_block_forward.1} parent=0 // pred_check
    _
  $region35: #{basic_block_forward.1} parent=0 // pred_check_branch
    %1868 = sbr.rel (0) target = $region37
  $region36: #{basic_block_forward.1} parent=0 // pred_region
    _
  $region37: #{basic_block_forward.1} parent=0 // pred_fallthru
    _

</llo_original>
